<compile_context>
chip_gen: v6e
topology: v6e:2x2x1
jax: 0.10.0
libtpu: 0.0.40
codegen_flags: <defaults>
</compile_context>

<pallas_src>
import functools

import jax
import jax.numpy as jnp
from jax.experimental import pallas as pl
from jax.experimental.pallas import tpu as pltpu


def _round_up(x, m):
    return (x + m - 1) // m * m


# ---------------------------------------------------------------------------
# Tiled matmul (+ bias + optional hardtanh): conv-as-im2col & LSTM input proj.
# ---------------------------------------------------------------------------

def _mm_bias_kernel(x_ref, w_ref, b_ref, o_ref, acc_ref, *, act):
    @pl.when(pl.program_id(2) == 0)
    def _():
        acc_ref[...] = jnp.zeros_like(acc_ref)

    acc_ref[...] += jnp.dot(x_ref[...], w_ref[...],
                            preferred_element_type=jnp.float32)

    @pl.when(pl.program_id(2) == pl.num_programs(2) - 1)
    def _():
        y = acc_ref[...] + b_ref[...]
        if act == "hardtanh":
            y = jnp.clip(y, 0.0, 20.0)
        o_ref[...] = y.astype(o_ref.dtype)


def tiled_matmul_bias(x, w, b, *, act=None, out_dtype=jnp.float32,
                      bias_pad_value=0.0, tm=256, tn=128, tk=512):
    """(M,K) @ (K,N) + b[N] with fused epilogue.  M/K/N are zero-padded to
    tile multiples (exact for the matmul); returns the (M, N) slice."""
    M, K = x.shape
    Kw, N = w.shape
    assert K == Kw
    tm = min(tm, _round_up(M, 16))
    tn = min(tn, _round_up(N, 128))
    tk = min(tk, _round_up(K, 128))
    Mp, Kp, Np = _round_up(M, tm), _round_up(K, tk), _round_up(N, tn)

    xp = jnp.pad(x, ((0, Mp - M), (0, Kp - K))).astype(jnp.bfloat16)
    wp = jnp.pad(w, ((0, Kp - K), (0, Np - N))).astype(jnp.bfloat16)
    bp = jnp.pad(b.reshape(1, N).astype(jnp.float32),
                 ((0, 0), (0, Np - N)), constant_values=bias_pad_value)

    out = pl.pallas_call(
        functools.partial(_mm_bias_kernel, act=act),
        out_shape=jax.ShapeDtypeStruct((Mp, Np), out_dtype),
        grid=(Mp // tm, Np // tn, Kp // tk),
        in_specs=[
            pl.BlockSpec((tm, tk), lambda i, j, k: (i, k)),
            pl.BlockSpec((tk, tn), lambda i, j, k: (k, j)),
            pl.BlockSpec((1, tn), lambda i, j, k: (0, j)),
        ],
        out_specs=pl.BlockSpec((tm, tn), lambda i, j, k: (i, j)),
        scratch_shapes=[pltpu.VMEM((tm, tn), jnp.float32)],
        compiler_params=pltpu.CompilerParams(
            dimension_semantics=("parallel", "parallel", "arbitrary")),
    )(xp, wp, bp)
    return out[:M, :N]


# ---------------------------------------------------------------------------
# Conv2d + folded-BatchNorm + HardTanh  (im2col + fused tiled matmul)
# ---------------------------------------------------------------------------

def _im2col_nhwc(x, kh, kw, sh, sw, ph, pw):
    # x: (B, F, T, C)  ->  patches (B*Fo*To, C*kh*kw) in torch (C, KH, KW) order
    B, Fi, Ti, C = x.shape
    Fo = (Fi + 2 * ph - kh) // sh + 1
    To = (Ti + 2 * pw - kw) // sw + 1
    xp = jnp.pad(x, ((0, 0), (ph, ph), (pw, pw), (0, 0)))
    cols = []
    for ih in range(kh):
        for iw in range(kw):
            cols.append(xp[:, ih::sh, iw::sw, :][:, :Fo, :To, :])
    stacked = jnp.stack(cols, axis=0).reshape(kh, kw, B, Fo, To, C)
    patches = jnp.transpose(stacked, (2, 3, 4, 5, 0, 1))
    return patches.reshape(B * Fo * To, C * kh * kw), Fo, To


def conv_bn_hardtanh(x, w, b, gamma, beta, rmean, rvar, stride, padding,
                     eps=1e-5):
    # x: (B, F, T, Cin) bf16  ->  (B, Fo, To, Cout) bf16
    # TODO(synk): conv1's im2col inflates HBM traffic by ~kh*kw; a direct
    # shifted-accumulate conv kernel would avoid materializing the patches.
    Cout, Cin, KH, KW = w.shape
    patches, Fo, To = _im2col_nhwc(x, KH, KW, stride[0], stride[1],
                                   padding[0], padding[1])
    s = gamma / jnp.sqrt(rvar + eps)                            # BN scale
    w_mat = jnp.transpose(w.reshape(Cout, Cin * KH * KW)) * s.reshape(1, Cout)
    t = beta + (b - rmean) * s                                  # folded shift
    out = tiled_matmul_bias(patches, w_mat, t, act="hardtanh",
                            out_dtype=jnp.bfloat16)
    B = x.shape[0]
    return out.reshape(B, Fo, To, Cout)


# ---------------------------------------------------------------------------
# LSTM recurrence: grid over blocks of TT timesteps, h/c state in VMEM scratch,
# gate slabs 128-lane aligned, W_hh resident across the whole grid.
# ---------------------------------------------------------------------------

def _lstm_recurrence_kernel(xproj_ref, whh_ref, hout_ref, h_scr, c_scr):
    Hp = h_scr.shape[-1]
    TT = xproj_ref.shape[0]

    @pl.when(pl.program_id(0) == 0)
    def _():
        h_scr[...] = jnp.zeros_like(h_scr)
        c_scr[...] = jnp.zeros_like(c_scr)

    w = whh_ref[...]                              # (Hp, 4*Hp) bf16, resident
    # Statically unrolled serial recurrence over the TT timesteps of this block
    # (static indices -> free slices; gates ordered [i, f, g, o] like torch).
    for tt in range(TT):
        gates = xproj_ref[tt] + jnp.dot(
            h_scr[...].astype(jnp.bfloat16), w,
            preferred_element_type=jnp.float32)
        i = jax.nn.sigmoid(gates[:, 0 * Hp:1 * Hp])
        f = jax.nn.sigmoid(gates[:, 1 * Hp:2 * Hp])
        g = jnp.tanh(gates[:, 2 * Hp:3 * Hp])
        o = jax.nn.sigmoid(gates[:, 3 * Hp:4 * Hp])
        c = f * c_scr[...] + i * g
        h = o * jnp.tanh(c)
        h_scr[...] = h
        c_scr[...] = c
        hout_ref[tt] = h.astype(hout_ref.dtype)


def lstm_recurrence(xproj_tm, whh_p, tt_block):
    # xproj_tm: (Tp, Bp, 4*Hp) f32 time-major; whh_p: (Hp, 4*Hp)
    Tp, Bp, H4p = xproj_tm.shape
    Hp = H4p // 4
    return pl.pallas_call(
        _lstm_recurrence_kernel,
        out_shape=jax.ShapeDtypeStruct((Tp, Bp, Hp), jnp.bfloat16),
        grid=(Tp // tt_block,),
        in_specs=[
            pl.BlockSpec((tt_block, Bp, H4p), lambda t: (t, 0, 0)),
            pl.BlockSpec((Hp, H4p), lambda t: (0, 0)),       # resident weight
        ],
        out_specs=pl.BlockSpec((tt_block, Bp, Hp), lambda t: (t, 0, 0)),
        scratch_shapes=[pltpu.VMEM((Bp, Hp), jnp.float32),
                        pltpu.VMEM((Bp, Hp), jnp.float32)],
        compiler_params=pltpu.CompilerParams(
            dimension_semantics=("arbitrary",)),
    )(xproj_tm, whh_p.astype(jnp.bfloat16))


# ---------------------------------------------------------------------------
# Final Linear + log_softmax (N kept fully resident, padded to 128 lanes)
# ---------------------------------------------------------------------------

def _fc_logsoftmax_kernel(x_ref, w_ref, b_ref, o_ref, acc_ref):
    @pl.when(pl.program_id(1) == 0)
    def _():
        acc_ref[...] = jnp.zeros_like(acc_ref)

    acc_ref[...] += jnp.dot(x_ref[...], w_ref[...],
                            preferred_element_type=jnp.float32)

    @pl.when(pl.program_id(1) == pl.num_programs(1) - 1)
    def _():
        logits = acc_ref[...] + b_ref[...]   # padded cols carry -1e30 bias
        m = jnp.max(logits, axis=-1, keepdims=True)
        lse = m + jnp.log(jnp.sum(jnp.exp(logits - m), axis=-1, keepdims=True))
        o_ref[...] = logits - lse


def fc_logsoftmax(x, w_p, b_p, *, tm=256, tk=512):
    M, K = x.shape
    Kw, Np = w_p.shape                       # Np is a multiple of 128
    tm = min(tm, _round_up(M, 16))
    tk = min(tk, _round_up(K, 128))
    Mp, Kp = _round_up(M, tm), _round_up(K, tk)
    xp = jnp.pad(x, ((0, Mp - M), (0, Kp - K))).astype(jnp.bfloat16)
    wp = jnp.pad(w_p, ((0, Kp - Kw), (0, 0))).astype(jnp.bfloat16)
    out = pl.pallas_call(
        _fc_logsoftmax_kernel,
        out_shape=jax.ShapeDtypeStruct((Mp, Np), jnp.float32),
        grid=(Mp // tm, Kp // tk),
        in_specs=[
            pl.BlockSpec((tm, tk), lambda i, k: (i, k)),
            pl.BlockSpec((tk, Np), lambda i, k: (k, 0)),
            pl.BlockSpec((1, Np), lambda i, k: (0, 0)),
        ],
        out_specs=pl.BlockSpec((tm, Np), lambda i, k: (i, 0)),
        scratch_shapes=[pltpu.VMEM((tm, Np), jnp.float32)],
        compiler_params=pltpu.CompilerParams(
            dimension_semantics=("parallel", "arbitrary")),
    )(xp, wp, b_p.reshape(1, Np).astype(jnp.float32))
    return out[:M]


# ---------------------------------------------------------------------------
# Parameter init (torch-equivalent layout) and forward pass
# ---------------------------------------------------------------------------

def init_params(key, num_mels, n_tokens, rnn_hidden_size, num_rnn_layers):
    keys = iter(jax.random.split(key, 64))

    def u(k, shape, scale):
        return jax.random.uniform(k, shape, jnp.float32, -scale, scale)

    def bn(c):
        return (
            1.0 + 0.1 * jax.random.normal(next(keys), (c,), jnp.float32),   # gamma
            0.1 * jax.random.normal(next(keys), (c,), jnp.float32),         # beta
            0.1 * jax.random.normal(next(keys), (c,), jnp.float32),         # running_mean
            1.0 + 0.1 * jnp.abs(jax.random.normal(next(keys), (c,), jnp.float32)),  # running_var
        )

    params = {}
    s1 = 1.0 / ((1 * 11 * 41) ** 0.5)
    params['conv1'] = (u(next(keys), (32, 1, 11, 41), s1),
                       u(next(keys), (32,), s1)) + bn(32)

    s2 = 1.0 / ((32 * 11 * 21) ** 0.5)
    params['conv2'] = (u(next(keys), (32, 32, 11, 21), s2),
                       u(next(keys), (32,), s2)) + bn(32)

    H = rnn_hidden_size
    D = 32 * (num_mels // 2)
    sh = 1.0 / (H ** 0.5)
    lstm = []
    for _ in range(num_rnn_layers):
        w_ih = u(next(keys), (4 * H, D), sh)
        w_hh = u(next(keys), (4 * H, H), sh)
        bias = u(next(keys), (4 * H,), sh) + u(next(keys), (4 * H,), sh)  # b_ih+b_hh
        lstm.append((jnp.transpose(w_ih), jnp.transpose(w_hh), bias))
        D = H
    params['lstm'] = lstm

    params['fc'] = (u(next(keys), (H, n_tokens), sh),
                    u(next(keys), (n_tokens,), sh))
    return params


def _pad_gate_cols(mat, H, Hp):
    # mat: (..., 4H) with torch gate order [i|f|g|o] -> (..., 4*Hp), each gate
    # in its own 128-lane-aligned slab.
    parts = []
    for g in range(4):
        blk = mat[..., g * H:(g + 1) * H]
        parts.append(jnp.pad(blk, [(0, 0)] * (mat.ndim - 1) + [(0, Hp - H)]))
    return jnp.concatenate(parts, axis=-1)


def simple_deepspeech2_forward(params, spectrogram, spectrogram_length,
                               tt_block=8):
    B, n_mels, T = spectrogram.shape

    # ---- conv stack in (B, Freq, Time, C) layout (no NCHW round trips) ------
    x = spectrogram[:, :, :, None].astype(jnp.bfloat16)          # (B, F, T, 1)
    x = conv_bn_hardtanh(x, *params['conv1'], stride=(2, 2), padding=(5, 20))
    x = conv_bn_hardtanh(x, *params['conv2'], stride=(1, 2), padding=(5, 10))
    _, F2, T2, C = x.shape

    # torch: (B,C,F,T) -> (B,T,C*F) with feature index c*F + f.  We go
    # time-major (T, B, C*F) so the LSTM layers never transpose (B,T)<->(T,B).
    feat = jnp.transpose(x, (2, 0, 3, 1)).reshape(T2, B, C * F2)

    D0 = C * F2
    Tp = _round_up(T2, tt_block)
    Bp = _round_up(B, 16)
    D0p = _round_up(D0, 128)
    h_tm = jnp.pad(feat, ((0, Tp - T2), (0, Bp - B), (0, D0p - D0)))  # bf16

    # ---- LSTM stack (time-major, gate slabs padded to Hp) -------------------
    H = params['lstm'][0][1].shape[0]
    Hp = _round_up(H, 128)
    for (w_ih_t, w_hh_t, bias) in params['lstm']:
        Din = w_ih_t.shape[0]
        Dinp = h_tm.shape[-1]
        w_ih_p = _pad_gate_cols(jnp.pad(w_ih_t, ((0, Dinp - Din), (0, 0))), H, Hp)
        w_hh_p = _pad_gate_cols(jnp.pad(w_hh_t, ((0, Hp - H), (0, 0))), H, Hp)
        bias_p = _pad_gate_cols(bias.reshape(1, -1), H, Hp).reshape(-1)

        xproj = tiled_matmul_bias(h_tm.reshape(Tp * Bp, Dinp), w_ih_p, bias_p,
                                  act=None, out_dtype=jnp.float32)
        xproj_tm = xproj.reshape(Tp, Bp, 4 * Hp)
        h_tm = lstm_recurrence(xproj_tm, w_hh_p, tt_block)  # (Tp, Bp, Hp) bf16
        # TODO(synk): inter-layer LSTM dropout (p=0.1) is a no-op at inference.

    # ---- Linear + log_softmax ------------------------------------------------
    w_fc_t, b_fc = params['fc']
    n_tokens = w_fc_t.shape[1]
    Ntokp = _round_up(n_tokens, 128)
    w_fc_p = jnp.pad(w_fc_t, ((0, Hp - H), (0, Ntokp - n_tokens)))
    b_fc_p = jnp.pad(b_fc, ((0, Ntokp - n_tokens),), constant_values=-1e30)

    logp = fc_logsoftmax(h_tm.reshape(Tp * Bp, Hp), w_fc_p, b_fc_p)
    log_probs = jnp.transpose(
        logp.reshape(Tp, Bp, Ntokp)[:T2, :B, :n_tokens], (1, 0, 2))
    # matches torch compute_output_lengths
    log_probs_length = spectrogram_length // 4
    return {'log_probs': log_probs, 'log_probs_length': log_probs_length}


if __name__ == "__main__":
    key = jax.random.PRNGKey(0)
    k_param, k_x = jax.random.split(key)

    B, num_mels, T = 2, 16, 32
    n_tokens, rnn_hidden_size, num_rnn_layers = 16, 32, 2

    params = init_params(k_param, num_mels, n_tokens,
                         rnn_hidden_size, num_rnn_layers)
    spectrogram = jax.random.normal(k_x, (B, num_mels, T), jnp.float32)
    spectrogram_length = jnp.array([T, T - 4], dtype=jnp.int32)

    out = simple_deepspeech2_forward(params, spectrogram, spectrogram_length)
    jax.block_until_ready(out['log_probs'])
    jax.block_until_ready(out['log_probs_length'])

    assert out['log_probs'].shape == (B, T // 4, n_tokens), out['log_probs'].shape
    assert out['log_probs_length'].shape == (B,)
    assert bool(jnp.all(jnp.isfinite(out['log_probs'])))
    # log_softmax sanity: probabilities sum to ~1 for every (b, t)
    assert bool(jnp.allclose(jnp.sum(jnp.exp(out['log_probs']), axis=-1),
                             1.0, atol=1e-3))
    print("KERNEL_OK")
</pallas_src>

<mosaic_0001>
module attributes {stable_mosaic.version = 11 : i64} {
  func.func @_mm_bias_kernel(%arg0: i32, %arg1: i32, %arg2: i32, %arg3: memref<256x512xbf16, #tpu.memory_space<vmem>>, %arg4: memref<512x128xbf16, #tpu.memory_space<vmem>>, %arg5: memref<1x128xf32, #tpu.memory_space<vmem>>, %arg6: memref<256x128xbf16, #tpu.memory_space<vmem>>, %arg7: memref<256x128xf32, #tpu.memory_space<vmem>>) attributes {dimension_semantics = [#tpu.dimension_semantics<parallel>, #tpu.dimension_semantics<parallel>, #tpu.dimension_semantics<arbitrary>], iteration_bounds = array<i64: 1, 1, 1>, scalar_prefetch = 0 : i64, scratch_operands = 1 : i64, tpu.core_type = #tpu.core_type<tc>, window_params = [{transform_indices = @transform_0, window_bounds = array<i64: 256, 512>}, {transform_indices = @transform_1, window_bounds = array<i64: 512, 128>}, {transform_indices = @transform_2, window_bounds = array<i64: 1, 128>}, {transform_indices = @transform_3, window_bounds = array<i64: 256, 128>}]} {
    %c0_i32 = arith.constant 0 : i32
    %0 = arith.cmpi eq, %arg2, %c0_i32 : i32
    %1 = arith.extui %0 : i1 to i32
    %c0_i32_0 = arith.constant 0 : i32
    %2 = arith.cmpi ne, %1, %c0_i32_0 : i32
    scf.if %2 {
      %cst_10 = arith.constant 0.000000e+00 : f32
      %12 = vector.broadcast %cst_10 : f32 to vector<256x128xf32>
      %c0_11 = arith.constant 0 : index
      %c0_12 = arith.constant 0 : index
      %13 = vector.load %arg7[%c0_11, %c0_12] : memref<256x128xf32, #tpu.memory_space<vmem>>, vector<256x128xf32>
      tpu.vector_store %arg7[%c0_11, %c0_12], %12 {strides = array<i32>} : memref<256x128xf32, #tpu.memory_space<vmem>>, vector<256x128xf32>,
    } else {
    }
    %c0 = arith.constant 0 : index
    %c0_1 = arith.constant 0 : index
    %3 = vector.load %arg7[%c0, %c0_1] : memref<256x128xf32, #tpu.memory_space<vmem>>, vector<256x128xf32>
    %c0_2 = arith.constant 0 : index
    %c0_3 = arith.constant 0 : index
    %4 = vector.load %arg3[%c0_2, %c0_3] : memref<256x512xbf16, #tpu.memory_space<vmem>>, vector<256x512xbf16>
    %c0_4 = arith.constant 0 : index
    %c0_5 = arith.constant 0 : index
    %5 = vector.load %arg4[%c0_4, %c0_5] : memref<512x128xbf16, #tpu.memory_space<vmem>>, vector<512x128xbf16>
    %cst = arith.constant dense<0.000000e+00> : vector<256x128xf32>
    %6 = tpu.matmul %4, %5, %cst {dimension_numbers = #tpu.dot_dimension_numbers<[1], [0], [0], [1], [0, 0, 1, 1], [], []>} : vector<256x512xbf16>, vector<512x128xbf16>, vector<256x128xf32> -> vector<256x128xf32>
    %7 = arith.addf %3, %6 : vector<256x128xf32>
    %c0_6 = arith.constant 0 : index
    %c0_7 = arith.constant 0 : index
    %8 = vector.load %arg7[%c0_6, %c0_7] : memref<256x128xf32, #tpu.memory_space<vmem>>, vector<256x128xf32>
    tpu.vector_store %arg7[%c0_6, %c0_7], %7 {strides = array<i32>} : memref<256x128xf32, #tpu.memory_space<vmem>>, vector<256x128xf32>,
    %c0_i32_8 = arith.constant 0 : i32
    %9 = arith.cmpi eq, %arg2, %c0_i32_8 : i32
    %10 = arith.extui %9 : i1 to i32
    %c0_i32_9 = arith.constant 0 : i32
    %11 = arith.cmpi ne, %10, %c0_i32_9 : i32
    scf.if %11 {
      %c0_10 = arith.constant 0 : index
      %c0_11 = arith.constant 0 : index
      %12 = vector.load %arg7[%c0_10, %c0_11] : memref<256x128xf32, #tpu.memory_space<vmem>>, vector<256x128xf32>
      %c0_12 = arith.constant 0 : index
      %c0_13 = arith.constant 0 : index
      %13 = vector.load %arg5[%c0_12, %c0_13] : memref<1x128xf32, #tpu.memory_space<vmem>>, vector<1x128xf32>
      %14 = vector.broadcast %13 : vector<1x128xf32> to vector<256x128xf32>
      %15 = arith.addf %12, %14 : vector<256x128xf32>
      %cst_14 = arith.constant 0.000000e+00 : f32
      %cst_15 = arith.constant 2.000000e+01 : f32
      %16 = vector.broadcast %cst_14 : f32 to vector<256x128xf32>
      %17 = arith.maximumf %16, %15 : vector<256x128xf32>
      %18 = vector.broadcast %cst_15 : f32 to vector<256x128xf32>
      %19 = arith.minimumf %18, %17 : vector<256x128xf32>
      %20 = arith.truncf %19 : vector<256x128xf32> to vector<256x128xbf16>
      %c0_16 = arith.constant 0 : index
      %c0_17 = arith.constant 0 : index
      %21 = vector.load %arg6[%c0_16, %c0_17] : memref<256x128xbf16, #tpu.memory_space<vmem>>, vector<256x128xbf16>
      tpu.vector_store %arg6[%c0_16, %c0_17], %20 {strides = array<i32>} : memref<256x128xbf16, #tpu.memory_space<vmem>>, vector<256x128xbf16>,
    } else {
    }
    return
  }
  func.func @transform_0(%arg0: i32, %arg1: i32, %arg2: i32) -> (i32, i32) {
    %c0_i32 = arith.constant 0 : i32
    return %arg0, %arg2 : i32, i32
  }
  func.func @transform_1(%arg0: i32, %arg1: i32, %arg2: i32) -> (i32, i32) {
    %c0_i32 = arith.constant 0 : i32
    return %arg2, %arg1 : i32, i32
  }
  func.func @transform_2(%arg0: i32, %arg1: i32, %arg2: i32) -> (i32, i32) {
    %c0_i32 = arith.constant 0 : i32
    %c0_i32_0 = arith.constant 0 : i32
    return %c0_i32, %arg1 : i32, i32
  }
  func.func @transform_3(%arg0: i32, %arg1: i32, %arg2: i32) -> (i32, i32) {
    %c0_i32 = arith.constant 0 : i32
    return %arg0, %arg1 : i32, i32
  }
}

</mosaic_0001>

<llo_original>
// kernel: tpu_custom_call.1
$region0: #{tpu_custom_call.1}
  #allocation0 [shape = 'u32[]', space=smem, size = 0x4, offset = 0x4, fixed_abs, tag = 'smem constant byte address 0x4 - core index']
  #allocation1 [shape = 'u32[144,128]{1,0:T(1,128)}', space=vmem, size = 0x12000, scoped, tag = 'internal scratch']
  #allocation2 [shape = 'f32[256,128]{1,0:T(8,128)}', space=vmem, size = 0x20000, scoped, tag = 'scratch operand']
  %s0 = inlined_call_operand.hbm [shape: bf16[256,512], index: 0, kind: input, shape index: {}]
  %s1 = inlined_call_operand.hbm [shape: bf16[512,128], index: 1, kind: input, shape index: {}]
  %s2 = inlined_call_operand.vmem [shape: f32[1,128], index: 2, kind: input, shape index: {}]
  %s3 = inlined_call_operand.hbm [shape: bf16[256,128], index: 3, kind: output, shape index: {}]
  %s4 = sld [smem:[#allocation0]]
  $region38: #{tpu_custom_call.1} parent=0
    _
  %s6 = ssub.s32 1, %s4
  %s7 = scalar_select 0, %s6, %s4
  $region1: #{tpu_custom_call.1} parent=0
    #allocation3 [shape = 'u8[262144]{0}', space=vmem, size = 0x40000, scoped, tag = 'input window, operand 0, single buffered']
    #allocation4 [shape = 's32[1]{0}', space=sflag, size = 0x4, scoped, tag = 'scoped memory for tpu_custom_call.1']
    #allocation5 [shape = 's32[1]{0}', space=sflag, size = 0x4, scoped, tag = 'scoped memory for tpu_custom_call.1']
    #allocation6 [shape = 'u8[131072]{0}', space=vmem, size = 0x20000, scoped, tag = 'input window, operand 1, single buffered']
    #allocation7 [shape = 's32[1]{0}', space=sflag, size = 0x4, scoped, tag = 'scoped memory for tpu_custom_call.1']
    #allocation8 [shape = 'u8[65536]{0}', space=vmem, size = 0x10000, scoped, tag = 'output window, operand 0, single buffered']
    %8 = vsyncpa [#allocation4], 0
    %9 = vsyncpa [#allocation7], 0
    %10 = vsyncpa [#allocation5], 0
    // Predicated region
    $region2: #{tpu_custom_call.1} parent=1 // pred_check
      _
    $region3: #{tpu_custom_call.1} parent=1 // pred_check_branch
      %12 = sbr.rel (0) target = $region5
    $region4: #{tpu_custom_call.1} parent=1 // pred_region
      %s14 = ssub.s32 8192, 8192
      %15 = vsyncadd [#allocation4], %s14
      %s16 = sshll.u32 [#allocation3], 4
      %s17 = int_to_ptr.vmem [resolvable:$true] %s16
      %22 = dma.hbm_to_vmem [thread:$0]  %s0, 8192, %s17, [#allocation4], 256, 256, 16
    $region5: #{tpu_custom_call.1} parent=1 // pred_fallthru
      _
    // Predicated region
    $region6: #{tpu_custom_call.1} parent=1 // pred_check
      _
    $region7: #{tpu_custom_call.1} parent=1 // pred_check_branch
      %24 = sbr.rel (0) target = $region9
    $region8: #{tpu_custom_call.1} parent=1 // pred_region
      %s26 = ssub.s32 4096, 4096
      %27 = vsyncadd [#allocation7], %s26
      %s28 = sshll.u32 [#allocation6], 4
      %s29 = int_to_ptr.vmem [resolvable:$true] %s28
      %34 = dma.hbm_to_vmem [thread:$0]  %s1, 4096, %s29, [#allocation7], 64, 64, 4
    $region9: #{tpu_custom_call.1} parent=1 // pred_fallthru
      _
    // Predicated region
    $region10: #{tpu_custom_call.1} parent=1 // pred_check
      _
    $region11: #{tpu_custom_call.1} parent=1 // pred_check_branch
      %36 = sbr.rel (0) target = $region13
    $region12: #{tpu_custom_call.1} parent=1 // pred_region
      _
    $region13: #{tpu_custom_call.1} parent=1 // pred_fallthru
      _
    // Predicated region
    $region14: #{tpu_custom_call.1} parent=1 // pred_check
      _
    $region15: #{tpu_custom_call.1} parent=1 // pred_check_branch
      %38 = sbr.rel (0) target = $region17
    $region16: #{tpu_custom_call.1} parent=1 // pred_region
      %39 = dma.done [#allocation4], 8192
    $region17: #{tpu_custom_call.1} parent=1 // pred_fallthru
      _
    // Predicated region
    $region18: #{tpu_custom_call.1} parent=1 // pred_check
      _
    $region19: #{tpu_custom_call.1} parent=1 // pred_check_branch
      %41 = sbr.rel (0) target = $region21
    $region20: #{tpu_custom_call.1} parent=1 // pred_region
      %42 = dma.done [#allocation7], 4096
    $region21: #{tpu_custom_call.1} parent=1 // pred_fallthru
      _
    %p44 = scmp.eq.s32.totalorder 0, 0
    // Predicated region
    $region22: #{tpu_custom_call.1} parent=1 // pred_check
      %p45 = pneg %p44
    $region23: #{tpu_custom_call.1} parent=1 // pred_check_branch
      %47 = sbr.rel (%p45) target = $region25
    $region24: #{tpu_custom_call.1} parent=1 // pred_region
      %48 = vst [vmem:[#allocation2] sm:$0xff] 0.0
      %49 = vst [vmem:[#allocation2 + $0x8] sm:$0xff] 0.0
      %50 = vst [vmem:[#allocation2 + $0x10] sm:$0xff] 0.0
      %51 = vst [vmem:[#allocation2 + $0x18] sm:$0xff] 0.0
      %52 = vst [vmem:[#allocation2 + $0x20] sm:$0xff] 0.0
      %53 = vst [vmem:[#allocation2 + $0x28] sm:$0xff] 0.0
      %54 = vst [vmem:[#allocation2 + $0x30] sm:$0xff] 0.0
      %55 = vst [vmem:[#allocation2 + $0x38] sm:$0xff] 0.0
      %56 = vst [vmem:[#allocation2 + $0x40] sm:$0xff] 0.0
      %57 = vst [vmem:[#allocation2 + $0x48] sm:$0xff] 0.0
      %58 = vst [vmem:[#allocation2 + $0x50] sm:$0xff] 0.0
      %59 = vst [vmem:[#allocation2 + $0x58] sm:$0xff] 0.0
      %60 = vst [vmem:[#allocation2 + $0x60] sm:$0xff] 0.0
      %61 = vst [vmem:[#allocation2 + $0x68] sm:$0xff] 0.0
      %62 = vst [vmem:[#allocation2 + $0x70] sm:$0xff] 0.0
      %63 = vst [vmem:[#allocation2 + $0x78] sm:$0xff] 0.0
      %64 = vst [vmem:[#allocation2 + $0x80] sm:$0xff] 0.0
      %65 = vst [vmem:[#allocation2 + $0x88] sm:$0xff] 0.0
      %66 = vst [vmem:[#allocation2 + $0x90] sm:$0xff] 0.0
      %67 = vst [vmem:[#allocation2 + $0x98] sm:$0xff] 0.0
      %68 = vst [vmem:[#allocation2 + $0xa0] sm:$0xff] 0.0
      %69 = vst [vmem:[#allocation2 + $0xa8] sm:$0xff] 0.0
      %70 = vst [vmem:[#allocation2 + $0xb0] sm:$0xff] 0.0
      %71 = vst [vmem:[#allocation2 + $0xb8] sm:$0xff] 0.0
      %72 = vst [vmem:[#allocation2 + $0xc0] sm:$0xff] 0.0
      %73 = vst [vmem:[#allocation2 + $0xc8] sm:$0xff] 0.0
      %74 = vst [vmem:[#allocation2 + $0xd0] sm:$0xff] 0.0
      %75 = vst [vmem:[#allocation2 + $0xd8] sm:$0xff] 0.0
      %76 = vst [vmem:[#allocation2 + $0xe0] sm:$0xff] 0.0
      %77 = vst [vmem:[#allocation2 + $0xe8] sm:$0xff] 0.0
      %78 = vst [vmem:[#allocation2 + $0xf0] sm:$0xff] 0.0
      %79 = vst [vmem:[#allocation2 + $0xf8] sm:$0xff] 0.0
    $region25: #{tpu_custom_call.1} parent=1 // pred_fallthru
      _
    %v80 = vld [vmem:[#allocation2] sm:$0xff]
    %v81 = vld [vmem:[#allocation2 + $0x8] sm:$0xff]
    %v82 = vld [vmem:[#allocation2 + $0x10] sm:$0xff]
    %v83 = vld [vmem:[#allocation2 + $0x18] sm:$0xff]
    %v84 = vld [vmem:[#allocation2 + $0x20] sm:$0xff]
    %v85 = vld [vmem:[#allocation2 + $0x28] sm:$0xff]
    %v86 = vld [vmem:[#allocation2 + $0x30] sm:$0xff]
    %v87 = vld [vmem:[#allocation2 + $0x38] sm:$0xff]
    %v88 = vld [vmem:[#allocation2 + $0x40] sm:$0xff]
    %v89 = vld [vmem:[#allocation2 + $0x48] sm:$0xff]
    %v90 = vld [vmem:[#allocation2 + $0x50] sm:$0xff]
    %v91 = vld [vmem:[#allocation2 + $0x58] sm:$0xff]
    %v92 = vld [vmem:[#allocation2 + $0x60] sm:$0xff]
    %v93 = vld [vmem:[#allocation2 + $0x68] sm:$0xff]
    %v94 = vld [vmem:[#allocation2 + $0x70] sm:$0xff]
    %v95 = vld [vmem:[#allocation2 + $0x78] sm:$0xff]
    %v96 = vld [vmem:[#allocation2 + $0x80] sm:$0xff]
    %v97 = vld [vmem:[#allocation2 + $0x88] sm:$0xff]
    %v98 = vld [vmem:[#allocation2 + $0x90] sm:$0xff]
    %v99 = vld [vmem:[#allocation2 + $0x98] sm:$0xff]
    %v100 = vld [vmem:[#allocation2 + $0xa0] sm:$0xff]
    %v101 = vld [vmem:[#allocation2 + $0xa8] sm:$0xff]
    %v102 = vld [vmem:[#allocation2 + $0xb0] sm:$0xff]
    %v103 = vld [vmem:[#allocation2 + $0xb8] sm:$0xff]
    %v104 = vld [vmem:[#allocation2 + $0xc0] sm:$0xff]
    %v105 = vld [vmem:[#allocation2 + $0xc8] sm:$0xff]
    %v106 = vld [vmem:[#allocation2 + $0xd0] sm:$0xff]
    %v107 = vld [vmem:[#allocation2 + $0xd8] sm:$0xff]
    %v108 = vld [vmem:[#allocation2 + $0xe0] sm:$0xff]
    %v109 = vld [vmem:[#allocation2 + $0xe8] sm:$0xff]
    %v110 = vld [vmem:[#allocation2 + $0xf0] sm:$0xff]
    %v111 = vld [vmem:[#allocation2 + $0xf8] sm:$0xff]
    %v112 = vld [vmem:[#allocation3] sm:$0xff]
    %v113 = vld [vmem:[#allocation3 + $0x8] sm:$0xff]
    %v114 = vld [vmem:[#allocation3 + $0x10] sm:$0xff]
    %v115 = vld [vmem:[#allocation3 + $0x18] sm:$0xff]
    %v116 = vld [vmem:[#allocation3 + $0x20] sm:$0xff]
    %v117 = vld [vmem:[#allocation3 + $0x28] sm:$0xff]
    %v118 = vld [vmem:[#allocation3 + $0x30] sm:$0xff]
    %v119 = vld [vmem:[#allocation3 + $0x38] sm:$0xff]
    %v120 = vld [vmem:[#allocation3 + $0x40] sm:$0xff]
    %v121 = vld [vmem:[#allocation3 + $0x48] sm:$0xff]
    %v122 = vld [vmem:[#allocation3 + $0x50] sm:$0xff]
    %v123 = vld [vmem:[#allocation3 + $0x58] sm:$0xff]
    %v124 = vld [vmem:[#allocation3 + $0x60] sm:$0xff]
    %v125 = vld [vmem:[#allocation3 + $0x68] sm:$0xff]
    %v126 = vld [vmem:[#allocation3 + $0x70] sm:$0xff]
    %v127 = vld [vmem:[#allocation3 + $0x78] sm:$0xff]
    %v128 = vld [vmem:[#allocation3 + $0x80] sm:$0xff]
    %v129 = vld [vmem:[#allocation3 + $0x88] sm:$0xff]
    %v130 = vld [vmem:[#allocation3 + $0x90] sm:$0xff]
    %v131 = vld [vmem:[#allocation3 + $0x98] sm:$0xff]
    %v132 = vld [vmem:[#allocation3 + $0xa0] sm:$0xff]
    %v133 = vld [vmem:[#allocation3 + $0xa8] sm:$0xff]
    %v134 = vld [vmem:[#allocation3 + $0xb0] sm:$0xff]
    %v135 = vld [vmem:[#allocation3 + $0xb8] sm:$0xff]
    %v136 = vld [vmem:[#allocation3 + $0xc0] sm:$0xff]
    %v137 = vld [vmem:[#allocation3 + $0xc8] sm:$0xff]
    %v138 = vld [vmem:[#allocation3 + $0xd0] sm:$0xff]
    %v139 = vld [vmem:[#allocation3 + $0xd8] sm:$0xff]
    %v140 = vld [vmem:[#allocation3 + $0xe0] sm:$0xff]
    %v141 = vld [vmem:[#allocation3 + $0xe8] sm:$0xff]
    %v142 = vld [vmem:[#allocation3 + $0xf0] sm:$0xff]
    %v143 = vld [vmem:[#allocation3 + $0xf8] sm:$0xff]
    %v144 = vld [vmem:[#allocation3 + $0x100] sm:$0xff]
    %v145 = vld [vmem:[#allocation3 + $0x108] sm:$0xff]
    %v146 = vld [vmem:[#allocation3 + $0x110] sm:$0xff]
    %v147 = vld [vmem:[#allocation3 + $0x118] sm:$0xff]
    %v148 = vld [vmem:[#allocation3 + $0x120] sm:$0xff]
    %v149 = vld [vmem:[#allocation3 + $0x128] sm:$0xff]
    %v150 = vld [vmem:[#allocation3 + $0x130] sm:$0xff]
    %v151 = vld [vmem:[#allocation3 + $0x138] sm:$0xff]
    %v152 = vld [vmem:[#allocation3 + $0x140] sm:$0xff]
    %v153 = vld [vmem:[#allocation3 + $0x148] sm:$0xff]
    %v154 = vld [vmem:[#allocation3 + $0x150] sm:$0xff]
    %v155 = vld [vmem:[#allocation3 + $0x158] sm:$0xff]
    %v156 = vld [vmem:[#allocation3 + $0x160] sm:$0xff]
    %v157 = vld [vmem:[#allocation3 + $0x168] sm:$0xff]
    %v158 = vld [vmem:[#allocation3 + $0x170] sm:$0xff]
    %v159 = vld [vmem:[#allocation3 + $0x178] sm:$0xff]
    %v160 = vld [vmem:[#allocation3 + $0x180] sm:$0xff]
    %v161 = vld [vmem:[#allocation3 + $0x188] sm:$0xff]
    %v162 = vld [vmem:[#allocation3 + $0x190] sm:$0xff]
    %v163 = vld [vmem:[#allocation3 + $0x198] sm:$0xff]
    %v164 = vld [vmem:[#allocation3 + $0x1a0] sm:$0xff]
    %v165 = vld [vmem:[#allocation3 + $0x1a8] sm:$0xff]
    %v166 = vld [vmem:[#allocation3 + $0x1b0] sm:$0xff]
    %v167 = vld [vmem:[#allocation3 + $0x1b8] sm:$0xff]
    %v168 = vld [vmem:[#allocation3 + $0x1c0] sm:$0xff]
    %v169 = vld [vmem:[#allocation3 + $0x1c8] sm:$0xff]
    %v170 = vld [vmem:[#allocation3 + $0x1d0] sm:$0xff]
    %v171 = vld [vmem:[#allocation3 + $0x1d8] sm:$0xff]
    %v172 = vld [vmem:[#allocation3 + $0x1e0] sm:$0xff]
    %v173 = vld [vmem:[#allocation3 + $0x1e8] sm:$0xff]
    %v174 = vld [vmem:[#allocation3 + $0x1f0] sm:$0xff]
    %v175 = vld [vmem:[#allocation3 + $0x1f8] sm:$0xff]
    %v176 = vld [vmem:[#allocation6] sm:$0xf]
    %v177 = vld [vmem:[#allocation6 + $0x4] sm:$0xf]
    %v178 = vld [vmem:[#allocation6 + $0x8] sm:$0xf]
    %v179 = vld [vmem:[#allocation6 + $0xc] sm:$0xf]
    %v180 = vld [vmem:[#allocation6 + $0x10] sm:$0xf]
    %v181 = vld [vmem:[#allocation6 + $0x14] sm:$0xf]
    %v182 = vld [vmem:[#allocation6 + $0x18] sm:$0xf]
    %v183 = vld [vmem:[#allocation6 + $0x1c] sm:$0xf]
    %v184 = vld [vmem:[#allocation6 + $0x20] sm:$0xf]
    %v185 = vld [vmem:[#allocation6 + $0x24] sm:$0xf]
    %v186 = vld [vmem:[#allocation6 + $0x28] sm:$0xf]
    %v187 = vld [vmem:[#allocation6 + $0x2c] sm:$0xf]
    %v188 = vld [vmem:[#allocation6 + $0x30] sm:$0xf]
    %v189 = vld [vmem:[#allocation6 + $0x34] sm:$0xf]
    %v190 = vld [vmem:[#allocation6 + $0x38] sm:$0xf]
    %v191 = vld [vmem:[#allocation6 + $0x3c] sm:$0xf]
    %v192 = vld [vmem:[#allocation6 + $0x40] sm:$0xf]
    %v193 = vld [vmem:[#allocation6 + $0x44] sm:$0xf]
    %v194 = vld [vmem:[#allocation6 + $0x48] sm:$0xf]
    %v195 = vld [vmem:[#allocation6 + $0x4c] sm:$0xf]
    %v196 = vld [vmem:[#allocation6 + $0x50] sm:$0xf]
    %v197 = vld [vmem:[#allocation6 + $0x54] sm:$0xf]
    %v198 = vld [vmem:[#allocation6 + $0x58] sm:$0xf]
    %v199 = vld [vmem:[#allocation6 + $0x5c] sm:$0xf]
    %v200 = vld [vmem:[#allocation6 + $0x60] sm:$0xf]
    %v201 = vld [vmem:[#allocation6 + $0x64] sm:$0xf]
    %v202 = vld [vmem:[#allocation6 + $0x68] sm:$0xf]
    %v203 = vld [vmem:[#allocation6 + $0x6c] sm:$0xf]
    %v204 = vld [vmem:[#allocation6 + $0x70] sm:$0xf]
    %v205 = vld [vmem:[#allocation6 + $0x74] sm:$0xf]
    %v206 = vld [vmem:[#allocation6 + $0x78] sm:$0xf]
    %v207 = vld [vmem:[#allocation6 + $0x7c] sm:$0xf]
    %v208 = vld [vmem:[#allocation6 + $0x80] sm:$0xf]
    %v209 = vld [vmem:[#allocation6 + $0x84] sm:$0xf]
    %v210 = vld [vmem:[#allocation6 + $0x88] sm:$0xf]
    %v211 = vld [vmem:[#allocation6 + $0x8c] sm:$0xf]
    %v212 = vld [vmem:[#allocation6 + $0x90] sm:$0xf]
    %v213 = vld [vmem:[#allocation6 + $0x94] sm:$0xf]
    %v214 = vld [vmem:[#allocation6 + $0x98] sm:$0xf]
    %v215 = vld [vmem:[#allocation6 + $0x9c] sm:$0xf]
    %v216 = vld [vmem:[#allocation6 + $0xa0] sm:$0xf]
    %v217 = vld [vmem:[#allocation6 + $0xa4] sm:$0xf]
    %v218 = vld [vmem:[#allocation6 + $0xa8] sm:$0xf]
    %v219 = vld [vmem:[#allocation6 + $0xac] sm:$0xf]
    %v220 = vld [vmem:[#allocation6 + $0xb0] sm:$0xf]
    %v221 = vld [vmem:[#allocation6 + $0xb4] sm:$0xf]
    %v222 = vld [vmem:[#allocation6 + $0xb8] sm:$0xf]
    %v223 = vld [vmem:[#allocation6 + $0xbc] sm:$0xf]
    %v224 = vld [vmem:[#allocation6 + $0xc0] sm:$0xf]
    %v225 = vld [vmem:[#allocation6 + $0xc4] sm:$0xf]
    %v226 = vld [vmem:[#allocation6 + $0xc8] sm:$0xf]
    %v227 = vld [vmem:[#allocation6 + $0xcc] sm:$0xf]
    %v228 = vld [vmem:[#allocation6 + $0xd0] sm:$0xf]
    %v229 = vld [vmem:[#allocation6 + $0xd4] sm:$0xf]
    %v230 = vld [vmem:[#allocation6 + $0xd8] sm:$0xf]
    %v231 = vld [vmem:[#allocation6 + $0xdc] sm:$0xf]
    %v232 = vld [vmem:[#allocation6 + $0xe0] sm:$0xf]
    %v233 = vld [vmem:[#allocation6 + $0xe4] sm:$0xf]
    %v234 = vld [vmem:[#allocation6 + $0xe8] sm:$0xf]
    %v235 = vld [vmem:[#allocation6 + $0xec] sm:$0xf]
    %v236 = vld [vmem:[#allocation6 + $0xf0] sm:$0xf]
    %v237 = vld [vmem:[#allocation6 + $0xf4] sm:$0xf]
    %v238 = vld [vmem:[#allocation6 + $0xf8] sm:$0xf]
    %v239 = vld [vmem:[#allocation6 + $0xfc] sm:$0xf]
    %v304 = vunpack.c.l.b16 %v112
    %v305 = vunpack.c.h.b16 %v112
    %v306 = vunpack.c.l.b16 %v113
    %v307 = vunpack.c.h.b16 %v113
    %v308 = vunpack.c.l.b16 %v114
    %v309 = vunpack.c.h.b16 %v114
    %v310 = vunpack.c.l.b16 %v115
    %v311 = vunpack.c.h.b16 %v115
    %v312 = vunpack.c.l.b16 %v116
    %v313 = vunpack.c.h.b16 %v116
    %v314 = vunpack.c.l.b16 %v117
    %v315 = vunpack.c.h.b16 %v117
    %v316 = vunpack.c.l.b16 %v118
    %v317 = vunpack.c.h.b16 %v118
    %v318 = vunpack.c.l.b16 %v119
    %v319 = vunpack.c.h.b16 %v119
    %v320 = vunpack.c.l.b16 %v120
    %v321 = vunpack.c.h.b16 %v120
    %v322 = vunpack.c.l.b16 %v121
    %v323 = vunpack.c.h.b16 %v121
    %v324 = vunpack.c.l.b16 %v122
    %v325 = vunpack.c.h.b16 %v122
    %v326 = vunpack.c.l.b16 %v123
    %v327 = vunpack.c.h.b16 %v123
    %v328 = vunpack.c.l.b16 %v124
    %v329 = vunpack.c.h.b16 %v124
    %v330 = vunpack.c.l.b16 %v125
    %v331 = vunpack.c.h.b16 %v125
    %v332 = vunpack.c.l.b16 %v126
    %v333 = vunpack.c.h.b16 %v126
    %v334 = vunpack.c.l.b16 %v127
    %v335 = vunpack.c.h.b16 %v127
    %v336 = vunpack.c.l.b16 %v128
    %v337 = vunpack.c.h.b16 %v128
    %v338 = vunpack.c.l.b16 %v129
    %v339 = vunpack.c.h.b16 %v129
    %v340 = vunpack.c.l.b16 %v130
    %v341 = vunpack.c.h.b16 %v130
    %v342 = vunpack.c.l.b16 %v131
    %v343 = vunpack.c.h.b16 %v131
    %v344 = vunpack.c.l.b16 %v132
    %v345 = vunpack.c.h.b16 %v132
    %v346 = vunpack.c.l.b16 %v133
    %v347 = vunpack.c.h.b16 %v133
    %v348 = vunpack.c.l.b16 %v134
    %v349 = vunpack.c.h.b16 %v134
    %v350 = vunpack.c.l.b16 %v135
    %v351 = vunpack.c.h.b16 %v135
    %v352 = vunpack.c.l.b16 %v136
    %v353 = vunpack.c.h.b16 %v136
    %v354 = vunpack.c.l.b16 %v137
    %v355 = vunpack.c.h.b16 %v137
    %v356 = vunpack.c.l.b16 %v138
    %v357 = vunpack.c.h.b16 %v138
    %v358 = vunpack.c.l.b16 %v139
    %v359 = vunpack.c.h.b16 %v139
    %v360 = vunpack.c.l.b16 %v140
    %v361 = vunpack.c.h.b16 %v140
    %v362 = vunpack.c.l.b16 %v141
    %v363 = vunpack.c.h.b16 %v141
    %v364 = vunpack.c.l.b16 %v142
    %v365 = vunpack.c.h.b16 %v142
    %v366 = vunpack.c.l.b16 %v143
    %v367 = vunpack.c.h.b16 %v143
    %v368 = vunpack.c.l.b16 %v144
    %v369 = vunpack.c.h.b16 %v144
    %v370 = vunpack.c.l.b16 %v145
    %v371 = vunpack.c.h.b16 %v145
    %v372 = vunpack.c.l.b16 %v146
    %v373 = vunpack.c.h.b16 %v146
    %v374 = vunpack.c.l.b16 %v147
    %v375 = vunpack.c.h.b16 %v147
    %v376 = vunpack.c.l.b16 %v148
    %v377 = vunpack.c.h.b16 %v148
    %v378 = vunpack.c.l.b16 %v149
    %v379 = vunpack.c.h.b16 %v149
    %v380 = vunpack.c.l.b16 %v150
    %v381 = vunpack.c.h.b16 %v150
    %v382 = vunpack.c.l.b16 %v151
    %v383 = vunpack.c.h.b16 %v151
    %v384 = vunpack.c.l.b16 %v152
    %v385 = vunpack.c.h.b16 %v152
    %v386 = vunpack.c.l.b16 %v153
    %v387 = vunpack.c.h.b16 %v153
    %v388 = vunpack.c.l.b16 %v154
    %v389 = vunpack.c.h.b16 %v154
    %v390 = vunpack.c.l.b16 %v155
    %v391 = vunpack.c.h.b16 %v155
    %v392 = vunpack.c.l.b16 %v156
    %v393 = vunpack.c.h.b16 %v156
    %v394 = vunpack.c.l.b16 %v157
    %v395 = vunpack.c.h.b16 %v157
    %v396 = vunpack.c.l.b16 %v158
    %v397 = vunpack.c.h.b16 %v158
    %v398 = vunpack.c.l.b16 %v159
    %v399 = vunpack.c.h.b16 %v159
    %v400 = vunpack.c.l.b16 %v160
    %v401 = vunpack.c.h.b16 %v160
    %v402 = vunpack.c.l.b16 %v161
    %v403 = vunpack.c.h.b16 %v161
    %v404 = vunpack.c.l.b16 %v162
    %v405 = vunpack.c.h.b16 %v162
    %v406 = vunpack.c.l.b16 %v163
    %v407 = vunpack.c.h.b16 %v163
    %v408 = vunpack.c.l.b16 %v164
    %v409 = vunpack.c.h.b16 %v164
    %v410 = vunpack.c.l.b16 %v165
    %v411 = vunpack.c.h.b16 %v165
    %v412 = vunpack.c.l.b16 %v166
    %v413 = vunpack.c.h.b16 %v166
    %v414 = vunpack.c.l.b16 %v167
    %v415 = vunpack.c.h.b16 %v167
    %v416 = vunpack.c.l.b16 %v168
    %v417 = vunpack.c.h.b16 %v168
    %v418 = vunpack.c.l.b16 %v169
    %v419 = vunpack.c.h.b16 %v169
    %v420 = vunpack.c.l.b16 %v170
    %v421 = vunpack.c.h.b16 %v170
    %v422 = vunpack.c.l.b16 %v171
    %v423 = vunpack.c.h.b16 %v171
    %v424 = vunpack.c.l.b16 %v172
    %v425 = vunpack.c.h.b16 %v172
    %v426 = vunpack.c.l.b16 %v173
    %v427 = vunpack.c.h.b16 %v173
    %v428 = vunpack.c.l.b16 %v174
    %v429 = vunpack.c.h.b16 %v174
    %v430 = vunpack.c.l.b16 %v175
    %v431 = vunpack.c.h.b16 %v175
    %v432 = vpack.c.b16 %v308, %v304
    %v433 = vpack.c.b16 %v309, %v305
    %v434 = vpack.c.b16 %v310, %v306
    %v435 = vpack.c.b16 %v311, %v307
    %v436 = vpack.c.b16 %v316, %v312
    %v437 = vpack.c.b16 %v317, %v313
    %v438 = vpack.c.b16 %v318, %v314
    %v439 = vpack.c.b16 %v319, %v315
    %v440 = vpack.c.b16 %v324, %v320
    %v441 = vpack.c.b16 %v325, %v321
    %v442 = vpack.c.b16 %v326, %v322
    %v443 = vpack.c.b16 %v327, %v323
    %v444 = vpack.c.b16 %v332, %v328
    %v445 = vpack.c.b16 %v333, %v329
    %v446 = vpack.c.b16 %v334, %v330
    %v447 = vpack.c.b16 %v335, %v331
    %v448 = vpack.c.b16 %v340, %v336
    %v449 = vpack.c.b16 %v341, %v337
    %v450 = vpack.c.b16 %v342, %v338
    %v451 = vpack.c.b16 %v343, %v339
    %v452 = vpack.c.b16 %v348, %v344
    %v453 = vpack.c.b16 %v349, %v345
    %v454 = vpack.c.b16 %v350, %v346
    %v455 = vpack.c.b16 %v351, %v347
    %v456 = vpack.c.b16 %v356, %v352
    %v457 = vpack.c.b16 %v357, %v353
    %v458 = vpack.c.b16 %v358, %v354
    %v459 = vpack.c.b16 %v359, %v355
    %v460 = vpack.c.b16 %v364, %v360
    %v461 = vpack.c.b16 %v365, %v361
    %v462 = vpack.c.b16 %v366, %v362
    %v463 = vpack.c.b16 %v367, %v363
    %v464 = vpack.c.b16 %v372, %v368
    %v465 = vpack.c.b16 %v373, %v369
    %v466 = vpack.c.b16 %v374, %v370
    %v467 = vpack.c.b16 %v375, %v371
    %v468 = vpack.c.b16 %v380, %v376
    %v469 = vpack.c.b16 %v381, %v377
    %v470 = vpack.c.b16 %v382, %v378
    %v471 = vpack.c.b16 %v383, %v379
    %v472 = vpack.c.b16 %v388, %v384
    %v473 = vpack.c.b16 %v389, %v385
    %v474 = vpack.c.b16 %v390, %v386
    %v475 = vpack.c.b16 %v391, %v387
    %v476 = vpack.c.b16 %v396, %v392
    %v477 = vpack.c.b16 %v397, %v393
    %v478 = vpack.c.b16 %v398, %v394
    %v479 = vpack.c.b16 %v399, %v395
    %v480 = vpack.c.b16 %v404, %v400
    %v481 = vpack.c.b16 %v405, %v401
    %v482 = vpack.c.b16 %v406, %v402
    %v483 = vpack.c.b16 %v407, %v403
    %v484 = vpack.c.b16 %v412, %v408
    %v485 = vpack.c.b16 %v413, %v409
    %v486 = vpack.c.b16 %v414, %v410
    %v487 = vpack.c.b16 %v415, %v411
    %v488 = vpack.c.b16 %v420, %v416
    %v489 = vpack.c.b16 %v421, %v417
    %v490 = vpack.c.b16 %v422, %v418
    %v491 = vpack.c.b16 %v423, %v419
    %v492 = vpack.c.b16 %v428, %v424
    %v493 = vpack.c.b16 %v429, %v425
    %v494 = vpack.c.b16 %v430, %v426
    %v495 = vpack.c.b16 %v431, %v427
    %v624 = vunpack.c.l.b16 %v176
    %v625 = vunpack.c.l.b16 %v177
    %v626 = vunpack.c.l.b16 %v178
    %v627 = vunpack.c.l.b16 %v179
    %v628 = vunpack.c.l.b16 %v180
    %v629 = vunpack.c.l.b16 %v181
    %v630 = vunpack.c.l.b16 %v182
    %v631 = vunpack.c.l.b16 %v183
    %v632 = vunpack.c.l.b16 %v184
    %v633 = vunpack.c.l.b16 %v185
    %v634 = vunpack.c.l.b16 %v186
    %v635 = vunpack.c.l.b16 %v187
    %v636 = vunpack.c.l.b16 %v188
    %v637 = vunpack.c.l.b16 %v189
    %v638 = vunpack.c.l.b16 %v190
    %v639 = vunpack.c.l.b16 %v191
    %v640 = vunpack.c.l.b16 %v192
    %v641 = vunpack.c.l.b16 %v193
    %v642 = vunpack.c.l.b16 %v194
    %v643 = vunpack.c.l.b16 %v195
    %v644 = vunpack.c.l.b16 %v196
    %v645 = vunpack.c.l.b16 %v197
    %v646 = vunpack.c.l.b16 %v198
    %v647 = vunpack.c.l.b16 %v199
    %v648 = vunpack.c.l.b16 %v200
    %v649 = vunpack.c.l.b16 %v201
    %v650 = vunpack.c.l.b16 %v202
    %v651 = vunpack.c.l.b16 %v203
    %v652 = vunpack.c.l.b16 %v204
    %v653 = vunpack.c.l.b16 %v205
    %v654 = vunpack.c.l.b16 %v206
    %v655 = vunpack.c.l.b16 %v207
    %v656 = vunpack.c.l.b16 %v208
    %v657 = vunpack.c.l.b16 %v209
    %v658 = vunpack.c.l.b16 %v210
    %v659 = vunpack.c.l.b16 %v211
    %v660 = vunpack.c.l.b16 %v212
    %v661 = vunpack.c.l.b16 %v213
    %v662 = vunpack.c.l.b16 %v214
    %v663 = vunpack.c.l.b16 %v215
    %v664 = vunpack.c.l.b16 %v216
    %v665 = vunpack.c.l.b16 %v217
    %v666 = vunpack.c.l.b16 %v218
    %v667 = vunpack.c.l.b16 %v219
    %v668 = vunpack.c.l.b16 %v220
    %v669 = vunpack.c.l.b16 %v221
    %v670 = vunpack.c.l.b16 %v222
    %v671 = vunpack.c.l.b16 %v223
    %v672 = vunpack.c.l.b16 %v224
    %v673 = vunpack.c.l.b16 %v225
    %v674 = vunpack.c.l.b16 %v226
    %v675 = vunpack.c.l.b16 %v227
    %v676 = vunpack.c.l.b16 %v228
    %v677 = vunpack.c.l.b16 %v229
    %v678 = vunpack.c.l.b16 %v230
    %v679 = vunpack.c.l.b16 %v231
    %v680 = vunpack.c.l.b16 %v232
    %v681 = vunpack.c.l.b16 %v233
    %v682 = vunpack.c.l.b16 %v234
    %v683 = vunpack.c.l.b16 %v235
    %v684 = vunpack.c.l.b16 %v236
    %v685 = vunpack.c.l.b16 %v237
    %v686 = vunpack.c.l.b16 %v238
    %v687 = vunpack.c.l.b16 %v239
    %v688 = vpack.c.b16 %v625, %v624
    %v689 = vpack.c.b16 %v627, %v626
    %v690 = vpack.c.b16 %v629, %v628
    %v691 = vpack.c.b16 %v631, %v630
    %v692 = vpack.c.b16 %v633, %v632
    %v693 = vpack.c.b16 %v635, %v634
    %v694 = vpack.c.b16 %v637, %v636
    %v695 = vpack.c.b16 %v639, %v638
    %v696 = vpack.c.b16 %v641, %v640
    %v697 = vpack.c.b16 %v643, %v642
    %v698 = vpack.c.b16 %v645, %v644
    %v699 = vpack.c.b16 %v647, %v646
    %v700 = vpack.c.b16 %v649, %v648
    %v701 = vpack.c.b16 %v651, %v650
    %v702 = vpack.c.b16 %v653, %v652
    %v703 = vpack.c.b16 %v655, %v654
    %v704 = vpack.c.b16 %v657, %v656
    %v705 = vpack.c.b16 %v659, %v658
    %v706 = vpack.c.b16 %v661, %v660
    %v707 = vpack.c.b16 %v663, %v662
    %v708 = vpack.c.b16 %v665, %v664
    %v709 = vpack.c.b16 %v667, %v666
    %v710 = vpack.c.b16 %v669, %v668
    %v711 = vpack.c.b16 %v671, %v670
    %v712 = vpack.c.b16 %v673, %v672
    %v713 = vpack.c.b16 %v675, %v674
    %v714 = vpack.c.b16 %v677, %v676
    %v715 = vpack.c.b16 %v679, %v678
    %v716 = vpack.c.b16 %v681, %v680
    %v717 = vpack.c.b16 %v683, %v682
    %v718 = vpack.c.b16 %v685, %v684
    %v719 = vpack.c.b16 %v687, %v686
    %752 = vmatprep.subr.bf16.mxu0 0
    %753 = vmatpush1.bf16.msra.mxu0 %v695
    %754 = vmatprep.subr.bf16.mxu0 0
    %755 = vmatpush1.bf16.msra.mxu0 %v694
    %756 = vmatprep.subr.bf16.mxu0 0
    %757 = vmatpush1.bf16.msra.mxu0 %v693
    %758 = vmatprep.subr.bf16.mxu0 0
    %759 = vmatpush1.bf16.msra.mxu0 %v692
    %760 = vmatprep.subr.bf16.mxu0 0
    %761 = vmatpush1.bf16.msra.mxu0 %v691
    %762 = vmatprep.subr.bf16.mxu0 0
    %763 = vmatpush1.bf16.msra.mxu0 %v690
    %764 = vmatprep.subr.bf16.mxu0 0
    %765 = vmatpush1.bf16.msra.mxu0 %v689
    %766 = vmatprep.subr.bf16.mxu0 0
    %767 = vmatpush1.bf16.msra.mxu0 %v688
    %768 = vmatprep.subr.bf16.mxu0 0
    %769 = vmatpush2.bf16.msra.mxu0 %v703
    %770 = vmatprep.subr.bf16.mxu0 0
    %771 = vmatpush2.bf16.msra.mxu0 %v702
    %772 = vmatprep.subr.bf16.mxu0 0
    %773 = vmatpush2.bf16.msra.mxu0 %v701
    %774 = vmatprep.subr.bf16.mxu0 0
    %775 = vmatpush2.bf16.msra.mxu0 %v700
    %776 = vmatprep.subr.bf16.mxu0 0
    %777 = vmatpush2.bf16.msra.mxu0 %v699
    %778 = vmatprep.subr.bf16.mxu0 0
    %779 = vmatpush2.bf16.msra.mxu0 %v698
    %780 = vmatprep.subr.bf16.mxu0 0
    %781 = vmatpush2.bf16.msra.mxu0 %v697
    %782 = vmatprep.subr.bf16.mxu0 0
    %783 = vmatpush2.bf16.msra.mxu0 %v696
    %784 = vmatprep.mubr.bf16.mxu0 %v433
    %785 = vmatmul.mubr.bf16.gmra.mxu0 %v432
    %v786 = vpop.f32.mrf.mxu0
    %v787 = vadd.f32 0.0, %v786
    %v788 = vpop.f32.mrf.mxu0
    %v789 = vpop.f32.mrf.mxu0
    %v790 = vadd.f32 0.0, %v789
    %v791 = vpop.f32.mrf.mxu0
    %792 = vmatprep.mubr.bf16.mxu0 %v437
    %793 = vmatmul.mubr.bf16.gmra.mxu0 %v436
    %v794 = vpop.f32.mrf.mxu0
    %v795 = vadd.f32 0.0, %v794
    %v796 = vpop.f32.mrf.mxu0
    %v797 = vpop.f32.mrf.mxu0
    %v798 = vadd.f32 0.0, %v797
    %v799 = vpop.f32.mrf.mxu0
    %800 = vmatprep.mubr.bf16.mxu0 %v441
    %801 = vmatmul.mubr.bf16.gmra.mxu0 %v440
    %v802 = vpop.f32.mrf.mxu0
    %v803 = vadd.f32 0.0, %v802
    %v804 = vpop.f32.mrf.mxu0
    %v805 = vpop.f32.mrf.mxu0
    %v806 = vadd.f32 0.0, %v805
    %v807 = vpop.f32.mrf.mxu0
    %808 = vmatprep.mubr.bf16.mxu0 %v445
    %809 = vmatmul.mubr.bf16.gmra.mxu0 %v444
    %v810 = vpop.f32.mrf.mxu0
    %v811 = vadd.f32 0.0, %v810
    %v812 = vpop.f32.mrf.mxu0
    %v813 = vpop.f32.mrf.mxu0
    %v814 = vadd.f32 0.0, %v813
    %v815 = vpop.f32.mrf.mxu0
    %816 = vmatprep.mubr.bf16.mxu0 %v449
    %817 = vmatmul.mubr.bf16.gmra.mxu0 %v448
    %v818 = vpop.f32.mrf.mxu0
    %v819 = vadd.f32 0.0, %v818
    %v820 = vpop.f32.mrf.mxu0
    %v821 = vpop.f32.mrf.mxu0
    %v822 = vadd.f32 0.0, %v821
    %v823 = vpop.f32.mrf.mxu0
    %824 = vmatprep.mubr.bf16.mxu0 %v453
    %825 = vmatmul.mubr.bf16.gmra.mxu0 %v452
    %v826 = vpop.f32.mrf.mxu0
    %v827 = vadd.f32 0.0, %v826
    %v828 = vpop.f32.mrf.mxu0
    %v829 = vpop.f32.mrf.mxu0
    %v830 = vadd.f32 0.0, %v829
    %v831 = vpop.f32.mrf.mxu0
    %832 = vmatprep.mubr.bf16.mxu0 %v457
    %833 = vmatmul.mubr.bf16.gmra.mxu0 %v456
    %v834 = vpop.f32.mrf.mxu0
    %v835 = vadd.f32 0.0, %v834
    %v836 = vpop.f32.mrf.mxu0
    %v837 = vpop.f32.mrf.mxu0
    %v838 = vadd.f32 0.0, %v837
    %v839 = vpop.f32.mrf.mxu0
    %840 = vmatprep.mubr.bf16.mxu0 %v461
    %841 = vmatmul.mubr.bf16.gmra.mxu0 %v460
    %v842 = vpop.f32.mrf.mxu0
    %v843 = vadd.f32 0.0, %v842
    %v844 = vpop.f32.mrf.mxu0
    %v845 = vpop.f32.mrf.mxu0
    %v846 = vadd.f32 0.0, %v845
    %v847 = vpop.f32.mrf.mxu0
    %848 = vmatprep.mubr.bf16.mxu0 %v465
    %849 = vmatmul.mubr.bf16.gmra.mxu0 %v464
    %v850 = vpop.f32.mrf.mxu0
    %v851 = vadd.f32 0.0, %v850
    %v852 = vpop.f32.mrf.mxu0
    %v853 = vpop.f32.mrf.mxu0
    %v854 = vadd.f32 0.0, %v853
    %v855 = vpop.f32.mrf.mxu0
    %856 = vmatprep.mubr.bf16.mxu0 %v469
    %857 = vmatmul.mubr.bf16.gmra.mxu0 %v468
    %v858 = vpop.f32.mrf.mxu0
    %v859 = vadd.f32 0.0, %v858
    %v860 = vpop.f32.mrf.mxu0
    %v861 = vpop.f32.mrf.mxu0
    %v862 = vadd.f32 0.0, %v861
    %v863 = vpop.f32.mrf.mxu0
    %864 = vmatprep.mubr.bf16.mxu0 %v473
    %865 = vmatmul.mubr.bf16.gmra.mxu0 %v472
    %v866 = vpop.f32.mrf.mxu0
    %v867 = vadd.f32 0.0, %v866
    %v868 = vpop.f32.mrf.mxu0
    %v869 = vpop.f32.mrf.mxu0
    %v870 = vadd.f32 0.0, %v869
    %v871 = vpop.f32.mrf.mxu0
    %872 = vmatprep.mubr.bf16.mxu0 %v477
    %873 = vmatmul.mubr.bf16.gmra.mxu0 %v476
    %v874 = vpop.f32.mrf.mxu0
    %v875 = vadd.f32 0.0, %v874
    %v876 = vpop.f32.mrf.mxu0
    %v877 = vpop.f32.mrf.mxu0
    %v878 = vadd.f32 0.0, %v877
    %v879 = vpop.f32.mrf.mxu0
    %880 = vmatprep.mubr.bf16.mxu0 %v481
    %881 = vmatmul.mubr.bf16.gmra.mxu0 %v480
    %v882 = vpop.f32.mrf.mxu0
    %v883 = vadd.f32 0.0, %v882
    %v884 = vpop.f32.mrf.mxu0
    %v885 = vpop.f32.mrf.mxu0
    %v886 = vadd.f32 0.0, %v885
    %v887 = vpop.f32.mrf.mxu0
    %888 = vmatprep.mubr.bf16.mxu0 %v485
    %889 = vmatmul.mubr.bf16.gmra.mxu0 %v484
    %v890 = vpop.f32.mrf.mxu0
    %v891 = vadd.f32 0.0, %v890
    %v892 = vpop.f32.mrf.mxu0
    %v893 = vpop.f32.mrf.mxu0
    %v894 = vadd.f32 0.0, %v893
    %v895 = vpop.f32.mrf.mxu0
    %896 = vmatprep.mubr.bf16.mxu0 %v489
    %897 = vmatmul.mubr.bf16.gmra.mxu0 %v488
    %v898 = vpop.f32.mrf.mxu0
    %v899 = vadd.f32 0.0, %v898
    %v900 = vpop.f32.mrf.mxu0
    %v901 = vpop.f32.mrf.mxu0
    %v902 = vadd.f32 0.0, %v901
    %v903 = vpop.f32.mrf.mxu0
    %904 = vmatprep.mubr.bf16.mxu0 %v493
    %905 = vmatmul.mubr.bf16.gmra.mxu0 %v492
    %v906 = vpop.f32.mrf.mxu0
    %v907 = vadd.f32 0.0, %v906
    %v908 = vpop.f32.mrf.mxu0
    %v909 = vpop.f32.mrf.mxu0
    %v910 = vadd.f32 0.0, %v909
    %v911 = vpop.f32.mrf.mxu0
    %912 = vdwg.mxu0
    %913 = vmatprep.subr.bf16.mxu0 0
    %914 = vmatpush1.bf16.msra.mxu0 %v711
    %915 = vmatprep.subr.bf16.mxu0 0
    %916 = vmatpush1.bf16.msra.mxu0 %v710
    %917 = vmatprep.subr.bf16.mxu0 0
    %918 = vmatpush1.bf16.msra.mxu0 %v709
    %919 = vmatprep.subr.bf16.mxu0 0
    %920 = vmatpush1.bf16.msra.mxu0 %v708
    %921 = vmatprep.subr.bf16.mxu0 0
    %922 = vmatpush1.bf16.msra.mxu0 %v707
    %923 = vmatprep.subr.bf16.mxu0 0
    %924 = vmatpush1.bf16.msra.mxu0 %v706
    %925 = vmatprep.subr.bf16.mxu0 0
    %926 = vmatpush1.bf16.msra.mxu0 %v705
    %927 = vmatprep.subr.bf16.mxu0 0
    %928 = vmatpush1.bf16.msra.mxu0 %v704
    %929 = vmatprep.subr.bf16.mxu0 0
    %930 = vmatpush2.bf16.msra.mxu0 %v719
    %931 = vmatprep.subr.bf16.mxu0 0
    %932 = vmatpush2.bf16.msra.mxu0 %v718
    %933 = vmatprep.subr.bf16.mxu0 0
    %934 = vmatpush2.bf16.msra.mxu0 %v717
    %935 = vmatprep.subr.bf16.mxu0 0
    %936 = vmatpush2.bf16.msra.mxu0 %v716
    %937 = vmatprep.subr.bf16.mxu0 0
    %938 = vmatpush2.bf16.msra.mxu0 %v715
    %939 = vmatprep.subr.bf16.mxu0 0
    %940 = vmatpush2.bf16.msra.mxu0 %v714
    %941 = vmatprep.subr.bf16.mxu0 0
    %942 = vmatpush2.bf16.msra.mxu0 %v713
    %943 = vmatprep.subr.bf16.mxu0 0
    %944 = vmatpush2.bf16.msra.mxu0 %v712
    %945 = vmatprep.mubr.bf16.mxu0 %v435
    %946 = vmatmul.mubr.bf16.gmra.mxu0 %v434
    %v947 = vpop.f32.mrf.mxu0
    %v948 = vadd.f32 %v787, %v947
    %v949 = vpop.f32.mrf.mxu0
    %v950 = vpop.f32.mrf.mxu0
    %v951 = vadd.f32 %v790, %v950
    %v952 = vpop.f32.mrf.mxu0
    %953 = vmatprep.mubr.bf16.mxu0 %v439
    %954 = vmatmul.mubr.bf16.gmra.mxu0 %v438
    %v955 = vpop.f32.mrf.mxu0
    %v956 = vadd.f32 %v795, %v955
    %v957 = vpop.f32.mrf.mxu0
    %v958 = vpop.f32.mrf.mxu0
    %v959 = vadd.f32 %v798, %v958
    %v960 = vpop.f32.mrf.mxu0
    %961 = vmatprep.mubr.bf16.mxu0 %v443
    %962 = vmatmul.mubr.bf16.gmra.mxu0 %v442
    %v963 = vpop.f32.mrf.mxu0
    %v964 = vadd.f32 %v803, %v963
    %v965 = vpop.f32.mrf.mxu0
    %v966 = vpop.f32.mrf.mxu0
    %v967 = vadd.f32 %v806, %v966
    %v968 = vpop.f32.mrf.mxu0
    %969 = vmatprep.mubr.bf16.mxu0 %v447
    %970 = vmatmul.mubr.bf16.gmra.mxu0 %v446
    %v971 = vpop.f32.mrf.mxu0
    %v972 = vadd.f32 %v811, %v971
    %v973 = vpop.f32.mrf.mxu0
    %v974 = vpop.f32.mrf.mxu0
    %v975 = vadd.f32 %v814, %v974
    %v976 = vpop.f32.mrf.mxu0
    %977 = vmatprep.mubr.bf16.mxu0 %v451
    %978 = vmatmul.mubr.bf16.gmra.mxu0 %v450
    %v979 = vpop.f32.mrf.mxu0
    %v980 = vadd.f32 %v819, %v979
    %v981 = vpop.f32.mrf.mxu0
    %v982 = vpop.f32.mrf.mxu0
    %v983 = vadd.f32 %v822, %v982
    %v984 = vpop.f32.mrf.mxu0
    %985 = vmatprep.mubr.bf16.mxu0 %v455
    %986 = vmatmul.mubr.bf16.gmra.mxu0 %v454
    %v987 = vpop.f32.mrf.mxu0
    %v988 = vadd.f32 %v827, %v987
    %v989 = vpop.f32.mrf.mxu0
    %v990 = vpop.f32.mrf.mxu0
    %v991 = vadd.f32 %v830, %v990
    %v992 = vpop.f32.mrf.mxu0
    %993 = vmatprep.mubr.bf16.mxu0 %v459
    %994 = vmatmul.mubr.bf16.gmra.mxu0 %v458
    %v995 = vpop.f32.mrf.mxu0
    %v996 = vadd.f32 %v835, %v995
    %v997 = vpop.f32.mrf.mxu0
    %v998 = vpop.f32.mrf.mxu0
    %v999 = vadd.f32 %v838, %v998
    %v1000 = vpop.f32.mrf.mxu0
    %1001 = vmatprep.mubr.bf16.mxu0 %v463
    %1002 = vmatmul.mubr.bf16.gmra.mxu0 %v462
    %v1003 = vpop.f32.mrf.mxu0
    %v1004 = vadd.f32 %v843, %v1003
    %v1005 = vpop.f32.mrf.mxu0
    %v1006 = vpop.f32.mrf.mxu0
    %v1007 = vadd.f32 %v846, %v1006
    %v1008 = vpop.f32.mrf.mxu0
    %1009 = vmatprep.mubr.bf16.mxu0 %v467
    %1010 = vmatmul.mubr.bf16.gmra.mxu0 %v466
    %v1011 = vpop.f32.mrf.mxu0
    %v1012 = vadd.f32 %v851, %v1011
    %v1013 = vpop.f32.mrf.mxu0
    %v1014 = vpop.f32.mrf.mxu0
    %v1015 = vadd.f32 %v854, %v1014
    %v1016 = vpop.f32.mrf.mxu0
    %1017 = vmatprep.mubr.bf16.mxu0 %v471
    %1018 = vmatmul.mubr.bf16.gmra.mxu0 %v470
    %v1019 = vpop.f32.mrf.mxu0
    %v1020 = vadd.f32 %v859, %v1019
    %v1021 = vpop.f32.mrf.mxu0
    %v1022 = vpop.f32.mrf.mxu0
    %v1023 = vadd.f32 %v862, %v1022
    %v1024 = vpop.f32.mrf.mxu0
    %1025 = vmatprep.mubr.bf16.mxu0 %v475
    %1026 = vmatmul.mubr.bf16.gmra.mxu0 %v474
    %v1027 = vpop.f32.mrf.mxu0
    %v1028 = vadd.f32 %v867, %v1027
    %v1029 = vpop.f32.mrf.mxu0
    %v1030 = vpop.f32.mrf.mxu0
    %v1031 = vadd.f32 %v870, %v1030
    %v1032 = vpop.f32.mrf.mxu0
    %1033 = vmatprep.mubr.bf16.mxu0 %v479
    %1034 = vmatmul.mubr.bf16.gmra.mxu0 %v478
    %v1035 = vpop.f32.mrf.mxu0
    %v1036 = vadd.f32 %v875, %v1035
    %v1037 = vpop.f32.mrf.mxu0
    %v1038 = vpop.f32.mrf.mxu0
    %v1039 = vadd.f32 %v878, %v1038
    %v1040 = vpop.f32.mrf.mxu0
    %1041 = vmatprep.mubr.bf16.mxu0 %v483
    %1042 = vmatmul.mubr.bf16.gmra.mxu0 %v482
    %v1043 = vpop.f32.mrf.mxu0
    %v1044 = vadd.f32 %v883, %v1043
    %v1045 = vpop.f32.mrf.mxu0
    %v1046 = vpop.f32.mrf.mxu0
    %v1047 = vadd.f32 %v886, %v1046
    %v1048 = vpop.f32.mrf.mxu0
    %1049 = vmatprep.mubr.bf16.mxu0 %v487
    %1050 = vmatmul.mubr.bf16.gmra.mxu0 %v486
    %v1051 = vpop.f32.mrf.mxu0
    %v1052 = vadd.f32 %v891, %v1051
    %v1053 = vpop.f32.mrf.mxu0
    %v1054 = vpop.f32.mrf.mxu0
    %v1055 = vadd.f32 %v894, %v1054
    %v1056 = vpop.f32.mrf.mxu0
    %1057 = vmatprep.mubr.bf16.mxu0 %v491
    %1058 = vmatmul.mubr.bf16.gmra.mxu0 %v490
    %v1059 = vpop.f32.mrf.mxu0
    %v1060 = vadd.f32 %v899, %v1059
    %v1061 = vpop.f32.mrf.mxu0
    %v1062 = vpop.f32.mrf.mxu0
    %v1063 = vadd.f32 %v902, %v1062
    %v1064 = vpop.f32.mrf.mxu0
    %1065 = vmatprep.mubr.bf16.mxu0 %v495
    %1066 = vmatmul.mubr.bf16.gmra.mxu0 %v494
    %v1067 = vpop.f32.mrf.mxu0
    %v1068 = vadd.f32 %v907, %v1067
    %v1069 = vpop.f32.mrf.mxu0
    %v1070 = vpop.f32.mrf.mxu0
    %v1071 = vadd.f32 %v910, %v1070
    %v1072 = vpop.f32.mrf.mxu0
    %1073 = vdwg.mxu0
    %v1074 = vadd.f32 %v80, %v948
    %v1075 = vadd.f32 %v81, %v951
    %v1076 = vadd.f32 %v82, %v956
    %v1077 = vadd.f32 %v83, %v959
    %v1078 = vadd.f32 %v84, %v964
    %v1079 = vadd.f32 %v85, %v967
    %v1080 = vadd.f32 %v86, %v972
    %v1081 = vadd.f32 %v87, %v975
    %v1082 = vadd.f32 %v88, %v980
    %v1083 = vadd.f32 %v89, %v983
    %v1084 = vadd.f32 %v90, %v988
    %v1085 = vadd.f32 %v91, %v991
    %v1086 = vadd.f32 %v92, %v996
    %v1087 = vadd.f32 %v93, %v999
    %v1088 = vadd.f32 %v94, %v1004
    %v1089 = vadd.f32 %v95, %v1007
    %v1090 = vadd.f32 %v96, %v1012
    %v1091 = vadd.f32 %v97, %v1015
    %v1092 = vadd.f32 %v98, %v1020
    %v1093 = vadd.f32 %v99, %v1023
    %v1094 = vadd.f32 %v100, %v1028
    %v1095 = vadd.f32 %v101, %v1031
    %v1096 = vadd.f32 %v102, %v1036
    %v1097 = vadd.f32 %v103, %v1039
    %v1098 = vadd.f32 %v104, %v1044
    %v1099 = vadd.f32 %v105, %v1047
    %v1100 = vadd.f32 %v106, %v1052
    %v1101 = vadd.f32 %v107, %v1055
    %v1102 = vadd.f32 %v108, %v1060
    %v1103 = vadd.f32 %v109, %v1063
    %v1104 = vadd.f32 %v110, %v1068
    %v1105 = vadd.f32 %v111, %v1071
    %1106 = vst [vmem:[#allocation2] sm:$0xff] %v1074
    %1107 = vst [vmem:[#allocation2 + $0x8] sm:$0xff] %v1075
    %1108 = vst [vmem:[#allocation2 + $0x10] sm:$0xff] %v1076
    %1109 = vst [vmem:[#allocation2 + $0x18] sm:$0xff] %v1077
    %1110 = vst [vmem:[#allocation2 + $0x20] sm:$0xff] %v1078
    %1111 = vst [vmem:[#allocation2 + $0x28] sm:$0xff] %v1079
    %1112 = vst [vmem:[#allocation2 + $0x30] sm:$0xff] %v1080
    %1113 = vst [vmem:[#allocation2 + $0x38] sm:$0xff] %v1081
    %1114 = vst [vmem:[#allocation2 + $0x40] sm:$0xff] %v1082
    %1115 = vst [vmem:[#allocation2 + $0x48] sm:$0xff] %v1083
    %1116 = vst [vmem:[#allocation2 + $0x50] sm:$0xff] %v1084
    %1117 = vst [vmem:[#allocation2 + $0x58] sm:$0xff] %v1085
    %1118 = vst [vmem:[#allocation2 + $0x60] sm:$0xff] %v1086
    %1119 = vst [vmem:[#allocation2 + $0x68] sm:$0xff] %v1087
    %1120 = vst [vmem:[#allocation2 + $0x70] sm:$0xff] %v1088
    %1121 = vst [vmem:[#allocation2 + $0x78] sm:$0xff] %v1089
    %1122 = vst [vmem:[#allocation2 + $0x80] sm:$0xff] %v1090
    %1123 = vst [vmem:[#allocation2 + $0x88] sm:$0xff] %v1091
    %1124 = vst [vmem:[#allocation2 + $0x90] sm:$0xff] %v1092
    %1125 = vst [vmem:[#allocation2 + $0x98] sm:$0xff] %v1093
    %1126 = vst [vmem:[#allocation2 + $0xa0] sm:$0xff] %v1094
    %1127 = vst [vmem:[#allocation2 + $0xa8] sm:$0xff] %v1095
    %1128 = vst [vmem:[#allocation2 + $0xb0] sm:$0xff] %v1096
    %1129 = vst [vmem:[#allocation2 + $0xb8] sm:$0xff] %v1097
    %1130 = vst [vmem:[#allocation2 + $0xc0] sm:$0xff] %v1098
    %1131 = vst [vmem:[#allocation2 + $0xc8] sm:$0xff] %v1099
    %1132 = vst [vmem:[#allocation2 + $0xd0] sm:$0xff] %v1100
    %1133 = vst [vmem:[#allocation2 + $0xd8] sm:$0xff] %v1101
    %1134 = vst [vmem:[#allocation2 + $0xe0] sm:$0xff] %v1102
    %1135 = vst [vmem:[#allocation2 + $0xe8] sm:$0xff] %v1103
    %1136 = vst [vmem:[#allocation2 + $0xf0] sm:$0xff] %v1104
    %1137 = vst [vmem:[#allocation2 + $0xf8] sm:$0xff] %v1105
    // Predicated region
    $region26: #{tpu_custom_call.1} parent=1 // pred_check
      %p1138 = pneg %p44
    $region27: #{tpu_custom_call.1} parent=1 // pred_check_branch
      %1140 = sbr.rel (%p1138) target = $region29
    $region28: #{tpu_custom_call.1} parent=1 // pred_region
      %v1141 = vld [vmem:[#allocation2] sm:$0xff]
      %v1142 = vld [vmem:[#allocation2 + $0x8] sm:$0xff]
      %v1143 = vld [vmem:[#allocation2 + $0x10] sm:$0xff]
      %v1144 = vld [vmem:[#allocation2 + $0x18] sm:$0xff]
      %v1145 = vld [vmem:[#allocation2 + $0x20] sm:$0xff]
      %v1146 = vld [vmem:[#allocation2 + $0x28] sm:$0xff]
      %v1147 = vld [vmem:[#allocation2 + $0x30] sm:$0xff]
      %v1148 = vld [vmem:[#allocation2 + $0x38] sm:$0xff]
      %v1149 = vld [vmem:[#allocation2 + $0x40] sm:$0xff]
      %v1150 = vld [vmem:[#allocation2 + $0x48] sm:$0xff]
      %v1151 = vld [vmem:[#allocation2 + $0x50] sm:$0xff]
      %v1152 = vld [vmem:[#allocation2 + $0x58] sm:$0xff]
      %v1153 = vld [vmem:[#allocation2 + $0x60] sm:$0xff]
      %v1154 = vld [vmem:[#allocation2 + $0x68] sm:$0xff]
      %v1155 = vld [vmem:[#allocation2 + $0x70] sm:$0xff]
      %v1156 = vld [vmem:[#allocation2 + $0x78] sm:$0xff]
      %v1157 = vld [vmem:[#allocation2 + $0x80] sm:$0xff]
      %v1158 = vld [vmem:[#allocation2 + $0x88] sm:$0xff]
      %v1159 = vld [vmem:[#allocation2 + $0x90] sm:$0xff]
      %v1160 = vld [vmem:[#allocation2 + $0x98] sm:$0xff]
      %v1161 = vld [vmem:[#allocation2 + $0xa0] sm:$0xff]
      %v1162 = vld [vmem:[#allocation2 + $0xa8] sm:$0xff]
      %v1163 = vld [vmem:[#allocation2 + $0xb0] sm:$0xff]
      %v1164 = vld [vmem:[#allocation2 + $0xb8] sm:$0xff]
      %v1165 = vld [vmem:[#allocation2 + $0xc0] sm:$0xff]
      %v1166 = vld [vmem:[#allocation2 + $0xc8] sm:$0xff]
      %v1167 = vld [vmem:[#allocation2 + $0xd0] sm:$0xff]
      %v1168 = vld [vmem:[#allocation2 + $0xd8] sm:$0xff]
      %v1169 = vld [vmem:[#allocation2 + $0xe0] sm:$0xff]
      %v1170 = vld [vmem:[#allocation2 + $0xe8] sm:$0xff]
      %v1171 = vld [vmem:[#allocation2 + $0xf0] sm:$0xff]
      %v1172 = vld [vmem:[#allocation2 + $0xf8] sm:$0xff]
      %v1173 = vld [vmem:[%s2] sm:$0x1]
      %v1175 = vlaneseq
      %v1176 = vshrl.u32 %v1175, 7
      %v1177 = vsub.s32 0, %v1176
      %v1178 = vrot.slane %v1173, %v1177
      %v1180 = vadd.f32 %v1141, %v1178
      %v1181 = vadd.f32 %v1142, %v1178
      %v1182 = vadd.f32 %v1143, %v1178
      %v1183 = vadd.f32 %v1144, %v1178
      %v1184 = vadd.f32 %v1145, %v1178
      %v1185 = vadd.f32 %v1146, %v1178
      %v1186 = vadd.f32 %v1147, %v1178
      %v1187 = vadd.f32 %v1148, %v1178
      %v1188 = vadd.f32 %v1149, %v1178
      %v1189 = vadd.f32 %v1150, %v1178
      %v1190 = vadd.f32 %v1151, %v1178
      %v1191 = vadd.f32 %v1152, %v1178
      %v1192 = vadd.f32 %v1153, %v1178
      %v1193 = vadd.f32 %v1154, %v1178
      %v1194 = vadd.f32 %v1155, %v1178
      %v1195 = vadd.f32 %v1156, %v1178
      %v1196 = vadd.f32 %v1157, %v1178
      %v1197 = vadd.f32 %v1158, %v1178
      %v1198 = vadd.f32 %v1159, %v1178
      %v1199 = vadd.f32 %v1160, %v1178
      %v1200 = vadd.f32 %v1161, %v1178
      %v1201 = vadd.f32 %v1162, %v1178
      %v1202 = vadd.f32 %v1163, %v1178
      %v1203 = vadd.f32 %v1164, %v1178
      %v1204 = vadd.f32 %v1165, %v1178
      %v1205 = vadd.f32 %v1166, %v1178
      %v1206 = vadd.f32 %v1167, %v1178
      %v1207 = vadd.f32 %v1168, %v1178
      %v1208 = vadd.f32 %v1169, %v1178
      %v1209 = vadd.f32 %v1170, %v1178
      %v1210 = vadd.f32 %v1171, %v1178
      %v1211 = vadd.f32 %v1172, %v1178
      %v1212 = vmax.f32 %v1180, 0.0
      %v1213 = vmax.f32 %v1181, 0.0
      %v1214 = vmax.f32 %v1182, 0.0
      %v1215 = vmax.f32 %v1183, 0.0
      %v1216 = vmax.f32 %v1184, 0.0
      %v1217 = vmax.f32 %v1185, 0.0
      %v1218 = vmax.f32 %v1186, 0.0
      %v1219 = vmax.f32 %v1187, 0.0
      %v1220 = vmax.f32 %v1188, 0.0
      %v1221 = vmax.f32 %v1189, 0.0
      %v1222 = vmax.f32 %v1190, 0.0
      %v1223 = vmax.f32 %v1191, 0.0
      %v1224 = vmax.f32 %v1192, 0.0
      %v1225 = vmax.f32 %v1193, 0.0
      %v1226 = vmax.f32 %v1194, 0.0
      %v1227 = vmax.f32 %v1195, 0.0
      %v1228 = vmax.f32 %v1196, 0.0
      %v1229 = vmax.f32 %v1197, 0.0
      %v1230 = vmax.f32 %v1198, 0.0
      %v1231 = vmax.f32 %v1199, 0.0
      %v1232 = vmax.f32 %v1200, 0.0
      %v1233 = vmax.f32 %v1201, 0.0
      %v1234 = vmax.f32 %v1202, 0.0
      %v1235 = vmax.f32 %v1203, 0.0
      %v1236 = vmax.f32 %v1204, 0.0
      %v1237 = vmax.f32 %v1205, 0.0
      %v1238 = vmax.f32 %v1206, 0.0
      %v1239 = vmax.f32 %v1207, 0.0
      %v1240 = vmax.f32 %v1208, 0.0
      %v1241 = vmax.f32 %v1209, 0.0
      %v1242 = vmax.f32 %v1210, 0.0
      %v1243 = vmax.f32 %v1211, 0.0
      %v1244 = vmin.f32 %v1212, 20.0
      %v1245 = vmin.f32 %v1213, 20.0
      %v1246 = vmin.f32 %v1214, 20.0
      %v1247 = vmin.f32 %v1215, 20.0
      %v1248 = vmin.f32 %v1216, 20.0
      %v1249 = vmin.f32 %v1217, 20.0
      %v1250 = vmin.f32 %v1218, 20.0
      %v1251 = vmin.f32 %v1219, 20.0
      %v1252 = vmin.f32 %v1220, 20.0
      %v1253 = vmin.f32 %v1221, 20.0
      %v1254 = vmin.f32 %v1222, 20.0
      %v1255 = vmin.f32 %v1223, 20.0
      %v1256 = vmin.f32 %v1224, 20.0
      %v1257 = vmin.f32 %v1225, 20.0
      %v1258 = vmin.f32 %v1226, 20.0
      %v1259 = vmin.f32 %v1227, 20.0
      %v1260 = vmin.f32 %v1228, 20.0
      %v1261 = vmin.f32 %v1229, 20.0
      %v1262 = vmin.f32 %v1230, 20.0
      %v1263 = vmin.f32 %v1231, 20.0
      %v1264 = vmin.f32 %v1232, 20.0
      %v1265 = vmin.f32 %v1233, 20.0
      %v1266 = vmin.f32 %v1234, 20.0
      %v1267 = vmin.f32 %v1235, 20.0
      %v1268 = vmin.f32 %v1236, 20.0
      %v1269 = vmin.f32 %v1237, 20.0
      %v1270 = vmin.f32 %v1238, 20.0
      %v1271 = vmin.f32 %v1239, 20.0
      %v1272 = vmin.f32 %v1240, 20.0
      %v1273 = vmin.f32 %v1241, 20.0
      %v1274 = vmin.f32 %v1242, 20.0
      %v1275 = vmin.f32 %v1243, 20.0
      %v1276 = vpack.c.bf16 %v1245, %v1244
      %v1277 = vpack.c.bf16 %v1247, %v1246
      %v1278 = vpack.c.bf16 %v1249, %v1248
      %v1279 = vpack.c.bf16 %v1251, %v1250
      %v1280 = vpack.c.bf16 %v1253, %v1252
      %v1281 = vpack.c.bf16 %v1255, %v1254
      %v1282 = vpack.c.bf16 %v1257, %v1256
      %v1283 = vpack.c.bf16 %v1259, %v1258
      %v1284 = vpack.c.bf16 %v1261, %v1260
      %v1285 = vpack.c.bf16 %v1263, %v1262
      %v1286 = vpack.c.bf16 %v1265, %v1264
      %v1287 = vpack.c.bf16 %v1267, %v1266
      %v1288 = vpack.c.bf16 %v1269, %v1268
      %v1289 = vpack.c.bf16 %v1271, %v1270
      %v1290 = vpack.c.bf16 %v1273, %v1272
      %v1291 = vpack.c.bf16 %v1275, %v1274
      %v1308 = vunpack.c.l.b16 %v1276
      %v1309 = vunpack.c.h.b16 %v1276
      %v1310 = vunpack.c.l.b16 %v1277
      %v1311 = vunpack.c.h.b16 %v1277
      %v1312 = vunpack.c.l.b16 %v1278
      %v1313 = vunpack.c.h.b16 %v1278
      %v1314 = vunpack.c.l.b16 %v1279
      %v1315 = vunpack.c.h.b16 %v1279
      %v1316 = vunpack.c.l.b16 %v1280
      %v1317 = vunpack.c.h.b16 %v1280
      %v1318 = vunpack.c.l.b16 %v1281
      %v1319 = vunpack.c.h.b16 %v1281
      %v1320 = vunpack.c.l.b16 %v1282
      %v1321 = vunpack.c.h.b16 %v1282
      %v1322 = vunpack.c.l.b16 %v1283
      %v1323 = vunpack.c.h.b16 %v1283
      %v1324 = vunpack.c.l.b16 %v1284
      %v1325 = vunpack.c.h.b16 %v1284
      %v1326 = vunpack.c.l.b16 %v1285
      %v1327 = vunpack.c.h.b16 %v1285
      %v1328 = vunpack.c.l.b16 %v1286
      %v1329 = vunpack.c.h.b16 %v1286
      %v1330 = vunpack.c.l.b16 %v1287
      %v1331 = vunpack.c.h.b16 %v1287
      %v1332 = vunpack.c.l.b16 %v1288
      %v1333 = vunpack.c.h.b16 %v1288
      %v1334 = vunpack.c.l.b16 %v1289
      %v1335 = vunpack.c.h.b16 %v1289
      %v1336 = vunpack.c.l.b16 %v1290
      %v1337 = vunpack.c.h.b16 %v1290
      %v1338 = vunpack.c.l.b16 %v1291
      %v1339 = vunpack.c.h.b16 %v1291
      %v1340 = vpack.c.b16 %v1308, %v1308
      %v1341 = vpack.c.b16 %v1309, %v1309
      %v1342 = vpack.c.b16 %v1310, %v1310
      %v1343 = vpack.c.b16 %v1311, %v1311
      %v1344 = vpack.c.b16 %v1312, %v1312
      %v1345 = vpack.c.b16 %v1313, %v1313
      %v1346 = vpack.c.b16 %v1314, %v1314
      %v1347 = vpack.c.b16 %v1315, %v1315
      %v1348 = vpack.c.b16 %v1316, %v1316
      %v1349 = vpack.c.b16 %v1317, %v1317
      %v1350 = vpack.c.b16 %v1318, %v1318
      %v1351 = vpack.c.b16 %v1319, %v1319
      %v1352 = vpack.c.b16 %v1320, %v1320
      %v1353 = vpack.c.b16 %v1321, %v1321
      %v1354 = vpack.c.b16 %v1322, %v1322
      %v1355 = vpack.c.b16 %v1323, %v1323
      %v1356 = vpack.c.b16 %v1324, %v1324
      %v1357 = vpack.c.b16 %v1325, %v1325
      %v1358 = vpack.c.b16 %v1326, %v1326
      %v1359 = vpack.c.b16 %v1327, %v1327
      %v1360 = vpack.c.b16 %v1328, %v1328
      %v1361 = vpack.c.b16 %v1329, %v1329
      %v1362 = vpack.c.b16 %v1330, %v1330
      %v1363 = vpack.c.b16 %v1331, %v1331
      %v1364 = vpack.c.b16 %v1332, %v1332
      %v1365 = vpack.c.b16 %v1333, %v1333
      %v1366 = vpack.c.b16 %v1334, %v1334
      %v1367 = vpack.c.b16 %v1335, %v1335
      %v1368 = vpack.c.b16 %v1336, %v1336
      %v1369 = vpack.c.b16 %v1337, %v1337
      %v1370 = vpack.c.b16 %v1338, %v1338
      %v1371 = vpack.c.b16 %v1339, %v1339
      %1404 = vst [vmem:[#allocation8] sm:$0xf] %v1340
      %1405 = vst [vmem:[#allocation8 + $0x4] sm:$0xf] %v1341
      %1406 = vst [vmem:[#allocation8 + $0x8] sm:$0xf] %v1342
      %1407 = vst [vmem:[#allocation8 + $0xc] sm:$0xf] %v1343
      %1408 = vst [vmem:[#allocation8 + $0x10] sm:$0xf] %v1344
      %1409 = vst [vmem:[#allocation8 + $0x14] sm:$0xf] %v1345
      %1410 = vst [vmem:[#allocation8 + $0x18] sm:$0xf] %v1346
      %1411 = vst [vmem:[#allocation8 + $0x1c] sm:$0xf] %v1347
      %1412 = vst [vmem:[#allocation8 + $0x20] sm:$0xf] %v1348
      %1413 = vst [vmem:[#allocation8 + $0x24] sm:$0xf] %v1349
      %1414 = vst [vmem:[#allocation8 + $0x28] sm:$0xf] %v1350
      %1415 = vst [vmem:[#allocation8 + $0x2c] sm:$0xf] %v1351
      %1416 = vst [vmem:[#allocation8 + $0x30] sm:$0xf] %v1352
      %1417 = vst [vmem:[#allocation8 + $0x34] sm:$0xf] %v1353
      %1418 = vst [vmem:[#allocation8 + $0x38] sm:$0xf] %v1354
      %1419 = vst [vmem:[#allocation8 + $0x3c] sm:$0xf] %v1355
      %1420 = vst [vmem:[#allocation8 + $0x40] sm:$0xf] %v1356
      %1421 = vst [vmem:[#allocation8 + $0x44] sm:$0xf] %v1357
      %1422 = vst [vmem:[#allocation8 + $0x48] sm:$0xf] %v1358
      %1423 = vst [vmem:[#allocation8 + $0x4c] sm:$0xf] %v1359
      %1424 = vst [vmem:[#allocation8 + $0x50] sm:$0xf] %v1360
      %1425 = vst [vmem:[#allocation8 + $0x54] sm:$0xf] %v1361
      %1426 = vst [vmem:[#allocation8 + $0x58] sm:$0xf] %v1362
      %1427 = vst [vmem:[#allocation8 + $0x5c] sm:$0xf] %v1363
      %1428 = vst [vmem:[#allocation8 + $0x60] sm:$0xf] %v1364
      %1429 = vst [vmem:[#allocation8 + $0x64] sm:$0xf] %v1365
      %1430 = vst [vmem:[#allocation8 + $0x68] sm:$0xf] %v1366
      %1431 = vst [vmem:[#allocation8 + $0x6c] sm:$0xf] %v1367
      %1432 = vst [vmem:[#allocation8 + $0x70] sm:$0xf] %v1368
      %1433 = vst [vmem:[#allocation8 + $0x74] sm:$0xf] %v1369
      %1434 = vst [vmem:[#allocation8 + $0x78] sm:$0xf] %v1370
      %1435 = vst [vmem:[#allocation8 + $0x7c] sm:$0xf] %v1371
    $region29: #{tpu_custom_call.1} parent=1 // pred_fallthru
      _
    // Predicated region
    $region30: #{tpu_custom_call.1} parent=1 // pred_check
      _
    $region31: #{tpu_custom_call.1} parent=1 // pred_check_branch
      %1437 = sbr.rel (0) target = $region33
    $region32: #{tpu_custom_call.1} parent=1 // pred_region
      %s1439 = ssub.s32 2048, 2048
      %1440 = vsyncadd [#allocation5], %s1439
      %s1441 = sshll.u32 [#allocation8], 4
      %s1442 = int_to_ptr.vmem [resolvable:$true] %s1441
      %1447 = dma.vmem_to_hbm [thread:$0]  %s1442, 2048, %s3, [#allocation5], 64, 64, 4
    $region33: #{tpu_custom_call.1} parent=1 // pred_fallthru
      _
    // Predicated region
    $region34: #{tpu_custom_call.1} parent=1 // pred_check
      _
    $region35: #{tpu_custom_call.1} parent=1 // pred_check_branch
      %1449 = sbr.rel (0) target = $region37
    $region36: #{tpu_custom_call.1} parent=1 // pred_region
      %1450 = dma.done [#allocation5], 2048
    $region37: #{tpu_custom_call.1} parent=1 // pred_fallthru
      _
    %1451 = vsyncpa [#allocation4], 1
    %1452 = vsyncpa [#allocation7], 1
    %1453 = vsyncpa [#allocation5], 1

</llo_original>
